<compile_context>
chip_gen: v5e
topology: v5e:2x2
jax: 0.10.0
libtpu: 0.0.40
codegen_flags: <defaults>
</compile_context>

<pallas_src>
import jax
import jax.numpy as jnp
from jax.experimental import pallas as pl
from jax.experimental.pallas import tpu as pltpu


def _round_up(x, m):
    return -(-x // m) * m


def _cdiv(a, b):
    return -(-a // b)


# ----------------------------- Pallas kernel ------------------------------- #

def _build_fused_kernel(tt, slab_rows, nctx, hid, ctx):
    """Fused context-MLP + mask-apply kernel for one (batch, time-tile) cell."""

    def kernel(slab_ref, w1_ref, b1_ref, w2_ref, b2_ref, w3_ref, b3_ref, out_ref):
        # slab: (SR, F4) per-frame features, time on sublanes, cyclic halo:
        #   rows [0, tt+c)      -> frames [s, s+tt+c)
        #   rows [SR-c, SR)     -> frames [s-c, s)
        #   rows in between     -> unused padding
        x = slab_ref[...]                                             # (SR, F4)

        # Layer 1: all (2c+1) context offsets folded into ONE matmul (the
        # per-offset weights live in disjoint 16-lane groups).  Each group is
        # then realigned in time with a cheap sublane roll of a narrow
        # (SR, 16) slice; the cyclic halo layout makes the roll exact.
        z = jnp.dot(x, w1_ref[...], preferred_element_type=jnp.float32)  # (SR, nctx*hid)
        acc = None
        for k in range(nctx):
            part = z[:, k * hid:(k + 1) * hid]                        # (SR, hid)
            shift = (ctx - k) % slab_rows
            if shift:
                part = pltpu.roll(part, shift=shift, axis=0)
            acc = part if acc is None else acc + part

        h1 = jnp.maximum(acc[0:tt, :] + b1_ref[...], 0.0)             # (tt, hid)
        h2 = jnp.dot(h1, w2_ref[...], preferred_element_type=jnp.float32)
        h2 = jnp.maximum(h2 + b2_ref[...], 0.0)                       # (tt, hid)
        z3 = jnp.dot(h2, w3_ref[...], preferred_element_type=jnp.float32)
        m = jax.nn.sigmoid(z3[:, 0:1] + b3_ref[...])                  # (tt, 1)

        # Single masked write of all 4 stacked STFT planes (one broadcast,
        # one fully-contiguous output DMA).
        out_ref[...] = x[0:tt, :] * m

    return kernel


def _choose_time_tile(freq, t_frames, batch):
    # VMEM model (f32): slab + output blocks are lane-padded to a multiple of
    # 128 in VMEM and double-buffered by the pipeline; in-kernel values
    # (x, z, acc, h1, h2) add roughly three more tile-widths.
    lanes = _round_up(4 * freq, 128)
    per_col = 4 * (2 * 2 * lanes + 3 * lanes)            # bytes per time column
    budget = 16 * 1024 * 1024
    tt = (budget // per_col) // 128 * 128
    tt = max(128, min(int(tt), 2048))
    tt = min(tt, _round_up(t_frames, 128))
    # keep >= 2 grid cells when possible so both v7x TensorCores get work
    if batch * _cdiv(t_frames, tt) < 2 and t_frames > 128:
        tt = max(128, _round_up(_cdiv(t_frames, 2), 128))
    return tt


def mlp_mask_forward(slab, w1p, b1p, w2p, b2p, w3p, b3p, *, tt, ctx):
    """Run the fused context-MLP + masking kernel on the stacked-plane slab."""
    b, n_tiles, slab_rows, f4 = slab.shape
    hid = b1p.shape[1]
    nctx = w1p.shape[1] // hid
    t_pad = n_tiles * tt

    kernel = _build_fused_kernel(tt, slab_rows, nctx, hid, ctx)

    slab_spec = pl.BlockSpec((None, None, slab_rows, f4),
                             lambda bi, ji: (bi, ji, 0, 0))
    w1_spec = pl.BlockSpec((f4, nctx * hid), lambda bi, ji: (0, 0))
    vec_spec = pl.BlockSpec((1, hid), lambda bi, ji: (0, 0))
    w2_spec = pl.BlockSpec((hid, hid), lambda bi, ji: (0, 0))
    w3_spec = pl.BlockSpec((hid, w3p.shape[1]), lambda bi, ji: (0, 0))
    b3_spec = pl.BlockSpec((1, 1), lambda bi, ji: (0, 0))
    out_spec = pl.BlockSpec((None, tt, f4), lambda bi, ji: (bi, ji, 0))

    macs = slab_rows * f4 * nctx * hid + tt * hid * hid + tt * hid * w3p.shape[1]
    cost = pl.CostEstimate(
        flops=2 * b * n_tiles * macs,
        transcendentals=b * n_tiles * tt,
        bytes_accessed=4 * (b * n_tiles * (slab_rows + tt) * f4
                            + f4 * nctx * hid + 2 * hid + hid * hid
                            + hid * w3p.shape[1] + 1))

    return pl.pallas_call(
        kernel,
        grid=(b, n_tiles),
        in_specs=[slab_spec, w1_spec, vec_spec, w2_spec, vec_spec, w3_spec, b3_spec],
        out_specs=out_spec,
        out_shape=jax.ShapeDtypeStruct((b, t_pad, f4), jnp.float32),
        compiler_params=pltpu.CompilerParams(
            dimension_semantics=("parallel", "parallel"),
            vmem_limit_bytes=32 * 1024 * 1024),
        cost_estimate=cost,
    )(slab, w1p, b1p, w2p, b2p, w3p, b3p)


# ------------------------------- JAX glue ---------------------------------- #

def hann_window(n_fft):
    n = jnp.arange(n_fft, dtype=jnp.float32)
    return 0.5 * (1.0 - jnp.cos(2.0 * jnp.pi * n / n_fft))


def stft_jax(sig, n_fft, hop, window):
    # torch.stft defaults (center=True, reflect pad, onesided) -> (B, T, freq)
    pad = n_fft // 2
    sig_p = jnp.pad(sig, ((0, 0), (pad, pad)), mode="reflect")
    t_frames = 1 + (sig_p.shape[1] - n_fft) // hop
    idx = jnp.arange(t_frames)[:, None] * hop + jnp.arange(n_fft)[None, :]
    frames = sig_p[:, idx] * window[None, None, :]            # (B, T, n_fft)
    return jnp.fft.rfft(frames, axis=-1)                      # (B, T, freq)


def istft_jax(spec, n_fft, hop, window, length):
    # torch.istft defaults; time-major input (B, T, freq); single scatter-add OLA
    b, t_frames, _ = spec.shape
    frames = jnp.fft.irfft(spec, n=n_fft, axis=-1) * window[None, None, :]
    out_len = n_fft + hop * (t_frames - 1)
    pos = (jnp.arange(t_frames)[:, None] * hop
           + jnp.arange(n_fft)[None, :]).reshape(-1)
    ola = jnp.zeros((b, out_len), jnp.float32).at[:, pos].add(frames.reshape(b, -1))
    wsq = jnp.zeros((out_len,), jnp.float32).at[pos].add(
        jnp.tile(window * window, t_frames))
    pad = n_fft // 2
    ola = ola[:, pad:pad + length]
    wsq = wsq[pad:pad + length]
    return ola / jnp.where(wsq > 1e-11, wsq, 1.0)


class SimpleAmbienceExtractorPallas:
    def __init__(self, n_fft=64, hop_length=16, context_frames=2, key=None):
        self.n_fft = n_fft
        self.hop_length = hop_length
        self.context_frames = context_frames
        self.window = hann_window(n_fft)

        self.freq = n_fft // 2 + 1
        self.nctx = 2 * context_frames + 1
        self.f4 = 4 * self.freq
        self.hid = 16                                  # 15/10 hidden units -> 16 lanes
        flat = self.freq * self.nctx * 4

        key = jax.random.PRNGKey(42) if key is None else key
        k = jax.random.split(key, 6)
        # raw parameters (Linear layers, stored (in, out)) — reference layout
        self.w1 = jax.random.normal(k[0], (flat, 15), jnp.float32) / jnp.sqrt(flat)
        self.b1 = jax.random.normal(k[1], (15,), jnp.float32) * 0.01
        self.w2 = jax.random.normal(k[2], (15, 10), jnp.float32) / jnp.sqrt(15.0)
        self.b2 = jax.random.normal(k[3], (10,), jnp.float32) * 0.01
        self.w3 = jax.random.normal(k[4], (10, 1), jnp.float32) / jnp.sqrt(10.0)
        self.b3 = jax.random.normal(k[5], (1,), jnp.float32) * 0.01

        # ---- kernel-friendly packed parameters ----
        # Reference flat feature index is f*(2c+1)*4 + k*4 + ch; the kernel's
        # per-frame feature column is ch*freq + f, so regroup w1 rows per
        # context offset k and pack the (2c+1) offsets into disjoint 16-lane
        # groups of a single (f4, nctx*hid) layer-1 weight.
        w1_k = jnp.transpose(self.w1.reshape(self.freq, self.nctx, 4, 15),
                             (1, 2, 0, 3)).reshape(self.nctx, self.f4, 15)
        w1_k = jnp.concatenate(
            [w1_k, jnp.zeros((self.nctx, self.f4, self.hid - 15), jnp.float32)],
            axis=-1)
        self.w1p = jnp.transpose(w1_k, (1, 0, 2)).reshape(self.f4,
                                                          self.nctx * self.hid)
        self.b1p = jnp.zeros((1, self.hid), jnp.float32).at[0, :15].set(self.b1)
        self.w2p = jnp.zeros((self.hid, self.hid), jnp.float32).at[:15, :10].set(self.w2)
        self.b2p = jnp.zeros((1, self.hid), jnp.float32).at[0, :10].set(self.b2)
        self.w3p = jnp.zeros((self.hid, 8), jnp.float32).at[:10, 0].set(self.w3[:, 0])
        self.b3p = self.b3.reshape(1, 1)

    def __call__(self, x):
        # x: (B, 2, L) float32 -> reconstructed (B, 2, L)  (inference path)
        b, _, length = x.shape
        c = self.context_frames
        spec_l = stft_jax(x[:, 0], self.n_fft, self.hop_length, self.window)
        spec_r = stft_jax(x[:, 1], self.n_fft, self.hop_length, self.window)
        re_l, im_l = jnp.real(spec_l), jnp.imag(spec_l)
        re_r, im_r = jnp.real(spec_r), jnp.imag(spec_r)
        t_frames = re_l.shape[1]

        # Single stacked plane array, time-major: columns = [re_l|re_r|im_l|im_r].
        planes = jnp.concatenate([re_l, re_r, im_l, im_r], axis=-1)   # (B, T, F4)

        tt = _choose_time_tile(self.freq, t_frames, b)
        n_tiles = _cdiv(t_frames, tt)
        t_pad = n_tiles * tt
        halo = _round_up(2 * c, 8) if c > 0 else 0
        slab_rows = tt + halo

        # planes_ext[:, j, :] = frame (j - c), zero outside [0, t_frames)
        planes_ext = jnp.pad(planes, ((0, 0), (c, t_pad + c - t_frames), (0, 0)))
        rows = jnp.arange(slab_rows)
        # cyclic halo layout: rows [0, tt+c) -> frames [s, s+tt+c);
        #                     rows [SR-c, SR) -> frames [s-c, s); middle rows unused
        frame_off = jnp.where(rows < tt + c, rows, rows - slab_rows)
        idx = jnp.clip(jnp.arange(n_tiles)[:, None] * tt + frame_off[None, :] + c,
                       0, planes_ext.shape[1] - 1)                    # (nt, SR)
        slab = planes_ext[:, idx, :]                                  # (B, nt, SR, F4)

        # --- fused Pallas hot path: context-MLP + mask application ---
        masked = mlp_mask_forward(slab, self.w1p, self.b1p, self.w2p, self.b2p,
                                  self.w3p, self.b3p, tt=tt, ctx=c)   # (B, t_pad, F4)
        masked = masked[:, :t_frames, :]
        f = self.freq
        spec_l_m = masked[..., 0:f] + 1j * masked[..., 2 * f:3 * f]
        spec_r_m = masked[..., f:2 * f] + 1j * masked[..., 3 * f:4 * f]
        rec_l = istft_jax(spec_l_m, self.n_fft, self.hop_length, self.window, length)
        rec_r = istft_jax(spec_r_m, self.n_fft, self.hop_length, self.window, length)
        return jnp.stack([rec_l, rec_r], axis=1)                      # (B, 2, L)


# --------------------------- pure-JAX reference ----------------------------- #

def _reference_forward(model, x):
    """Mirror of the PyTorch module (duplicated context features), pure JAX."""
    b, _, length = x.shape
    c = model.context_frames
    spec_l = stft_jax(x[:, 0], model.n_fft, model.hop_length, model.window)
    spec_r = stft_jax(x[:, 1], model.n_fft, model.hop_length, model.window)
    re_l, im_l = jnp.real(spec_l), jnp.imag(spec_l)
    re_r, im_r = jnp.real(spec_r), jnp.imag(spec_r)
    feat = jnp.stack([re_l, re_r, im_l, im_r], axis=-1)               # (B, T, freq, 4)
    t_frames = feat.shape[1]
    padded = jnp.pad(feat, ((0, 0), (c, c), (0, 0), (0, 0)))
    ctx = jnp.stack([padded[:, t:t + 2 * c + 1] for t in range(t_frames)], axis=1)
    # (B, T, 2c+1, freq, 4) -> reference flat order (freq, ctx_offset, channel)
    ctx = jnp.transpose(ctx, (0, 1, 3, 2, 4)).reshape(b, t_frames, -1)
    hp = jax.lax.Precision.HIGHEST
    h1 = jnp.maximum(jnp.dot(ctx, model.w1, precision=hp) + model.b1, 0.0)
    h2 = jnp.maximum(jnp.dot(h1, model.w2, precision=hp) + model.b2, 0.0)
    y = jax.nn.sigmoid(jnp.dot(h2, model.w3, precision=hp) + model.b3)  # (B, T, 1)
    rec_l = istft_jax(spec_l * y, model.n_fft, model.hop_length, model.window, length)
    rec_r = istft_jax(spec_r * y, model.n_fft, model.hop_length, model.window, length)
    return jnp.stack([rec_l, rec_r], axis=1)


if __name__ == "__main__":
    # small shapes consistent with the module's forward (stereo raw audio)
    B, CH, L = 2, 2, 256
    key = jax.random.PRNGKey(0)
    x = jax.random.normal(key, (B, CH, L), jnp.float32)

    model = SimpleAmbienceExtractorPallas(n_fft=64, hop_length=16, context_frames=2)
    out = jax.block_until_ready(model(x))
    assert out.shape == (B, CH, L), out.shape

    ref = jax.block_until_ready(_reference_forward(model, x))
    err = float(jnp.max(jnp.abs(out - ref)))
    assert err < 5e-3, f"max abs error vs reference: {err}"
    print("KERNEL_OK")
</pallas_src>

<mosaic_0001>
module attributes {stable_mosaic.version = 11 : i64} {
  func.func @kernel(%arg0: i32, %arg1: i32, %arg2: memref<1x1x136x132xf32, #tpu.memory_space<vmem>>, %arg3: memref<132x80xf32, #tpu.memory_space<vmem>>, %arg4: memref<1x16xf32, #tpu.memory_space<vmem>>, %arg5: memref<16x16xf32, #tpu.memory_space<vmem>>, %arg6: memref<1x16xf32, #tpu.memory_space<vmem>>, %arg7: memref<16x8xf32, #tpu.memory_space<vmem>>, %arg8: memref<1x1xf32, #tpu.memory_space<vmem>>, %arg9: memref<1x128x132xf32, #tpu.memory_space<vmem>>) attributes {dimension_semantics = [#tpu.dimension_semantics<parallel>, #tpu.dimension_semantics<parallel>], iteration_bounds = array<i64: 2, 1>, scalar_prefetch = 0 : i64, scratch_operands = 0 : i64, tpu.core_type = #tpu.core_type<tc>, window_params = [{transform_indices = @transform_0, window_bounds = array<i64: 1, 1, 136, 132>}, {pipeline_mode = #tpu.pipeline_mode<synchronous>, transform_indices = @transform_1, window_bounds = array<i64: 132, 80>}, {pipeline_mode = #tpu.pipeline_mode<synchronous>, transform_indices = @transform_2, window_bounds = array<i64: 1, 16>}, {pipeline_mode = #tpu.pipeline_mode<synchronous>, transform_indices = @transform_3, window_bounds = array<i64: 16, 16>}, {pipeline_mode = #tpu.pipeline_mode<synchronous>, transform_indices = @transform_4, window_bounds = array<i64: 1, 16>}, {pipeline_mode = #tpu.pipeline_mode<synchronous>, transform_indices = @transform_5, window_bounds = array<i64: 16, 8>}, {pipeline_mode = #tpu.pipeline_mode<synchronous>, transform_indices = @transform_6, window_bounds = array<i64: 1, 1>}, {transform_indices = @transform_7, window_bounds = array<i64: 1, 128, 132>}]} {
    %c0 = arith.constant 0 : index
    %c0_0 = arith.constant 0 : index
    %c0_1 = arith.constant 0 : index
    %c0_2 = arith.constant 0 : index
    %0 = vector.load %arg2[%c0, %c0_0, %c0_1, %c0_2] : memref<1x1x136x132xf32, #tpu.memory_space<vmem>>, vector<1x1x136x132xf32>
    %1 = vector.shape_cast %0 : vector<1x1x136x132xf32> to vector<136x132xf32>
    %c0_3 = arith.constant 0 : index
    %c0_4 = arith.constant 0 : index
    %2 = vector.load %arg3[%c0_3, %c0_4] : memref<132x80xf32, #tpu.memory_space<vmem>>, vector<132x80xf32>
    %cst = arith.constant dense<0.000000e+00> : vector<136x80xf32>
    %3 = tpu.matmul %1, %2, %cst {dimension_numbers = #tpu.dot_dimension_numbers<[1], [0], [0], [1], [0, 0, 1, 1], [], []>} : vector<136x132xf32>, vector<132x80xf32>, vector<136x80xf32> -> vector<136x80xf32>
    %4 = vector.extract_strided_slice %3 {offsets = [0, 0], sizes = [136, 16], strides = [1, 1]} : vector<136x80xf32> to vector<136x16xf32>
    %c2_i32 = arith.constant 2 : i32
    %5 = tpu.dynamic_rotate %4 by %c2_i32 dim 0 : vector<136x16xf32>, i32 -> vector<136x16xf32>
    %6 = vector.extract_strided_slice %3 {offsets = [0, 16], sizes = [136, 16], strides = [1, 1]} : vector<136x80xf32> to vector<136x16xf32>
    %c1_i32 = arith.constant 1 : i32
    %7 = tpu.dynamic_rotate %6 by %c1_i32 dim 0 : vector<136x16xf32>, i32 -> vector<136x16xf32>
    %8 = arith.addf %5, %7 : vector<136x16xf32>
    %9 = vector.extract_strided_slice %3 {offsets = [0, 32], sizes = [136, 16], strides = [1, 1]} : vector<136x80xf32> to vector<136x16xf32>
    %10 = arith.addf %8, %9 : vector<136x16xf32>
    %11 = vector.extract_strided_slice %3 {offsets = [0, 48], sizes = [136, 16], strides = [1, 1]} : vector<136x80xf32> to vector<136x16xf32>
    %c135_i32 = arith.constant 135 : i32
    %12 = tpu.dynamic_rotate %11 by %c135_i32 dim 0 : vector<136x16xf32>, i32 -> vector<136x16xf32>
    %13 = arith.addf %10, %12 : vector<136x16xf32>
    %14 = vector.extract_strided_slice %3 {offsets = [0, 64], sizes = [136, 16], strides = [1, 1]} : vector<136x80xf32> to vector<136x16xf32>
    %c134_i32 = arith.constant 134 : i32
    %15 = tpu.dynamic_rotate %14 by %c134_i32 dim 0 : vector<136x16xf32>, i32 -> vector<136x16xf32>
    %16 = arith.addf %13, %15 : vector<136x16xf32>
    %17 = vector.extract_strided_slice %16 {offsets = [0, 0], sizes = [128, 16], strides = [1, 1]} : vector<136x16xf32> to vector<128x16xf32>
    %c0_5 = arith.constant 0 : index
    %c0_6 = arith.constant 0 : index
    %18 = vector.load %arg4[%c0_5, %c0_6] : memref<1x16xf32, #tpu.memory_space<vmem>>, vector<1x16xf32>
    %19 = vector.broadcast %18 : vector<1x16xf32> to vector<128x16xf32>
    %20 = arith.addf %17, %19 : vector<128x16xf32>
    %cst_7 = arith.constant 0.000000e+00 : f32
    %21 = vector.broadcast %cst_7 : f32 to vector<128x16xf32>
    %22 = arith.maximumf %20, %21 : vector<128x16xf32>
    %c0_8 = arith.constant 0 : index
    %c0_9 = arith.constant 0 : index
    %23 = vector.load %arg5[%c0_8, %c0_9] : memref<16x16xf32, #tpu.memory_space<vmem>>, vector<16x16xf32>
    %cst_10 = arith.constant dense<0.000000e+00> : vector<128x16xf32>
    %24 = tpu.matmul %22, %23, %cst_10 {dimension_numbers = #tpu.dot_dimension_numbers<[1], [0], [0], [1], [0, 0, 1, 1], [], []>} : vector<128x16xf32>, vector<16x16xf32>, vector<128x16xf32> -> vector<128x16xf32>
    %c0_11 = arith.constant 0 : index
    %c0_12 = arith.constant 0 : index
    %25 = vector.load %arg6[%c0_11, %c0_12] : memref<1x16xf32, #tpu.memory_space<vmem>>, vector<1x16xf32>
    %26 = vector.broadcast %25 : vector<1x16xf32> to vector<128x16xf32>
    %27 = arith.addf %24, %26 : vector<128x16xf32>
    %cst_13 = arith.constant 0.000000e+00 : f32
    %28 = vector.broadcast %cst_13 : f32 to vector<128x16xf32>
    %29 = arith.maximumf %27, %28 : vector<128x16xf32>
    %c0_14 = arith.constant 0 : index
    %c0_15 = arith.constant 0 : index
    %30 = vector.load %arg7[%c0_14, %c0_15] : memref<16x8xf32, #tpu.memory_space<vmem>>, vector<16x8xf32>
    %cst_16 = arith.constant dense<0.000000e+00> : vector<128x8xf32>
    %31 = tpu.matmul %29, %30, %cst_16 {dimension_numbers = #tpu.dot_dimension_numbers<[1], [0], [0], [1], [0, 0, 1, 1], [], []>} : vector<128x16xf32>, vector<16x8xf32>, vector<128x8xf32> -> vector<128x8xf32>
    %32 = vector.extract_strided_slice %31 {offsets = [0, 0], sizes = [128, 1], strides = [1, 1]} : vector<128x8xf32> to vector<128x1xf32>
    %c0_17 = arith.constant 0 : index
    %c0_18 = arith.constant 0 : index
    %33 = vector.load %arg8[%c0_17, %c0_18] : memref<1x1xf32, #tpu.memory_space<vmem>>, vector<1x1xf32>
    %34 = vector.broadcast %33 : vector<1x1xf32> to vector<128x1xf32>
    %35 = arith.addf %32, %34 : vector<128x1xf32>
    %36 = arith.negf %35 : vector<128x1xf32>
    %37 = math.exp %36 : vector<128x1xf32>
    %cst_19 = arith.constant 1.000000e+00 : f32
    %38 = vector.broadcast %cst_19 : f32 to vector<128x1xf32>
    %39 = arith.addf %38, %37 : vector<128x1xf32>
    %40 = arith.divf %38, %39 : vector<128x1xf32>
    %41 = vector.extract_strided_slice %1 {offsets = [0, 0], sizes = [128, 132], strides = [1, 1]} : vector<136x132xf32> to vector<128x132xf32>
    %42 = vector.broadcast %40 : vector<128x1xf32> to vector<128x132xf32>
    %43 = arith.mulf %41, %42 : vector<128x132xf32>
    %c0_20 = arith.constant 0 : index
    %c0_21 = arith.constant 0 : index
    %c0_22 = arith.constant 0 : index
    %44 = vector.load %arg9[%c0_20, %c0_21, %c0_22] : memref<1x128x132xf32, #tpu.memory_space<vmem>>, vector<1x128x132xf32>
    %45 = vector.shape_cast %44 : vector<1x128x132xf32> to vector<128x132xf32>
    %46 = vector.shape_cast %43 : vector<128x132xf32> to vector<1x128x132xf32>
    tpu.vector_store %arg9[%c0_20, %c0_21, %c0_22], %46 {strides = array<i32>} : memref<1x128x132xf32, #tpu.memory_space<vmem>>, vector<1x128x132xf32>,
    return
  }
  func.func @transform_0(%arg0: i32, %arg1: i32) -> (i32, i32, i32, i32) {
    %c0_i32 = arith.constant 0 : i32
    %c0_i32_0 = arith.constant 0 : i32
    %c0_i32_1 = arith.constant 0 : i32
    return %arg0, %arg1, %c0_i32, %c0_i32_0 : i32, i32, i32, i32
  }
  func.func @transform_1(%arg0: i32, %arg1: i32) -> (i32, i32) {
    %c0_i32 = arith.constant 0 : i32
    %c0_i32_0 = arith.constant 0 : i32
    %c0_i32_1 = arith.constant 0 : i32
    return %c0_i32, %c0_i32_0 : i32, i32
  }
  func.func @transform_2(%arg0: i32, %arg1: i32) -> (i32, i32) {
    %c0_i32 = arith.constant 0 : i32
    %c0_i32_0 = arith.constant 0 : i32
    %c0_i32_1 = arith.constant 0 : i32
    return %c0_i32, %c0_i32_0 : i32, i32
  }
  func.func @transform_3(%arg0: i32, %arg1: i32) -> (i32, i32) {
    %c0_i32 = arith.constant 0 : i32
    %c0_i32_0 = arith.constant 0 : i32
    %c0_i32_1 = arith.constant 0 : i32
    return %c0_i32, %c0_i32_0 : i32, i32
  }
  func.func @transform_4(%arg0: i32, %arg1: i32) -> (i32, i32) {
    %c0_i32 = arith.constant 0 : i32
    %c0_i32_0 = arith.constant 0 : i32
    %c0_i32_1 = arith.constant 0 : i32
    return %c0_i32, %c0_i32_0 : i32, i32
  }
  func.func @transform_5(%arg0: i32, %arg1: i32) -> (i32, i32) {
    %c0_i32 = arith.constant 0 : i32
    %c0_i32_0 = arith.constant 0 : i32
    %c0_i32_1 = arith.constant 0 : i32
    return %c0_i32, %c0_i32_0 : i32, i32
  }
  func.func @transform_6(%arg0: i32, %arg1: i32) -> (i32, i32) {
    %c0_i32 = arith.constant 0 : i32
    %c0_i32_0 = arith.constant 0 : i32
    %c0_i32_1 = arith.constant 0 : i32
    return %c0_i32, %c0_i32_0 : i32, i32
  }
  func.func @transform_7(%arg0: i32, %arg1: i32) -> (i32, i32, i32) {
    %c0_i32 = arith.constant 0 : i32
    %c0_i32_0 = arith.constant 0 : i32
    return %arg0, %arg1, %c0_i32 : i32, i32, i32
  }
}

</mosaic_0001>

<llo_original>
// kernel: tpu_custom_call.1
$region0: #{tpu_custom_call.1}
  #allocation0 [shape = 'u32[]', space=smem, size = 0x4, offset = 0x4, fixed_abs, tag = 'smem constant byte address 0x4 - core index']
  #allocation1 [shape = 'u32[72,128]{1,0:T(1,128)}', space=vmem, size = 0x9000, scoped, tag = 'internal scratch']
  #allocation2 [shape = 'f32[1,1]{1,0:T(1,128)S(1)}', space=vmem, size = 0x200, scoped, tag = 'scoped memory for tpu_custom_call.1']
  %s0 = inlined_call_operand.vmem [shape: f32[2,1,136,132], index: 0, kind: input, shape index: {}]
  %s1 = inlined_call_operand.vmem [shape: f32[132,80], index: 1, kind: input, shape index: {}]
  %s2 = inlined_call_operand.vmem [shape: f32[1,16], index: 2, kind: input, shape index: {}]
  %s3 = inlined_call_operand.vmem [shape: f32[16,16], index: 3, kind: input, shape index: {}]
  %s4 = inlined_call_operand.vmem [shape: f32[1,16], index: 4, kind: input, shape index: {}]
  %s5 = inlined_call_operand.vmem [shape: f32[16,8], index: 5, kind: input, shape index: {}]
  %s6 = inlined_call_operand.<no memory space> [shape: f32[1,1], index: 6, kind: input, shape index: {}]
  %s7 = inlined_call_operand.vmem [shape: f32[2,128,132], index: 7, kind: output, shape index: {}]
  %s8 = sld [smem:[#allocation0]]
  $region61: #{tpu_custom_call.1} parent=0
    _
  %s10 = ssub.s32 1, %s8
  %s11 = scalar_select 0, %s10, %s8
  %v12 = vstv %s6
  %13 = vst [vmem:[#allocation2] sm:$0x1] %v12
  loop: start=0, step=1, limit=4
  $region2: #{tpu_custom_call.1} parent=0 // loop_pre_header
    _
  $region3: #{tpu_custom_call.1} parent=0 // loop_header
    %s15 = sphi 0, %s19
    %p16 = scmp.ge.s32.totalorder %s15, 4
    %s22 = sphi 0, %s34
    %s23 = sphi 0, %s30
    %s24 = sphi 0, %s22
    %s25 = sphi 0, %s23
    %s26 = sphi 0, %s24
    %s27 = sphi 0, %s25
    %s39 = sphi 0, %s41
    %s42 = sphi 0, %s39
    %s43 = sphi 0, %s42
    %s59 = sphi 0, %s43
    %s63 = sphi 0, %s63
    %s65 = sphi 0, %s63
    %s66 = sphi 0, %s65
    %s80 = sphi 0, %s66
    %s84 = sphi 0, %s84
    %s86 = sphi 0, %s84
    %s87 = sphi 0, %s86
    %s101 = sphi 0, %s87
    %s105 = sphi 0, %s105
    %s107 = sphi 0, %s105
    %s108 = sphi 0, %s107
    %s122 = sphi 0, %s108
    %s126 = sphi 0, %s126
    %s128 = sphi 0, %s126
    %s129 = sphi 0, %s128
    %s143 = sphi 0, %s129
    %s147 = sphi 0, %s147
    %s149 = sphi 0, %s147
    %s150 = sphi 0, %s149
    %s164 = sphi 0, %s150
    %s168 = sphi 0, %s168
    %s170 = sphi 0, %s168
    %s171 = sphi 0, %s170
    %s185 = sphi 0, %s171
    %s193 = sphi 0, %s195
    %s196 = sphi 0, %s193
    %s197 = sphi 0, %s196
    %s213 = sphi 0, %s197
  $region4: #{tpu_custom_call.1} parent=0 // loop_header_branch
    %18 = sbr.rel (%p16) target = $region8
  $region5: #{tpu_custom_call.1} parent=0 // loop_body
    %s20 = ssub.s32 %s15, 1
    %s21 = ssub.s32 %s15, 2
    %s28 = sadd.s32 1, %s23
    %p29 = scmp.ge.s32.totalorder %s28, 1
    %s30 = scalar_select %p29, 0, %s28
    %s31 = sadd.s32 1, %s22
    %s32 = scalar_select %p29, %s31, %s22
    %p33 = scmp.ge.s32.totalorder %s32, 2
    %s34 = scalar_select %p33, 0, %s32
    %s35 = ssub.s32 %s22, %s34
    %s36 = ssub.s32 %s23, %s30
    %s37 = sor.u32 %s35, %s36
    %p38 = scmp.eq.s32.totalorder %s37, 0
    %s40 = sadd.s32 %s39, 1
    %s41 = scalar_select %p38, %s39, %s40
    %p44 = pneg %p38
    %p45 = scmp.eq.s32.totalorder %s15, 1
    %p46 = por %p44, %p45
    %p47 = scmp.ne.s32.totalorder %s39, %s42
    %p48 = scmp.eq.s32.totalorder %s15, 0
    %p49 = por %p47, %p48
    %p50 = scmp.ne.s32.totalorder %s39, %s42
    %p51 = scmp.eq.s32.totalorder %s20, 1
    %p52 = por %p50, %p51
    %p53 = scmp.ne.s32.totalorder %s42, %s43
    %p54 = scmp.eq.s32.totalorder %s20, 0
    %p55 = por %p53, %p54
    %p56 = scmp.ne.s32.totalorder %s42, %s43
    %p57 = scmp.eq.s32.totalorder %s21, 1
    %p58 = por %p56, %p57
    %p60 = scmp.ne.s32.totalorder %s43, %s59
    %p61 = scmp.eq.s32.totalorder %s21, 0
    %p62 = por %p60, %p61
    %s64 = sadd.s32 %s63, 1
    %p67 = scmp.eq.s32.totalorder %s15, 1
    %p68 = scmp.ne.s32.totalorder %s63, %s65
    %p69 = scmp.eq.s32.totalorder %s15, 0
    %p70 = por %p68, %p69
    %p71 = scmp.ne.s32.totalorder %s63, %s65
    %p72 = scmp.eq.s32.totalorder %s20, 1
    %p73 = por %p71, %p72
    %p74 = scmp.ne.s32.totalorder %s65, %s66
    %p75 = scmp.eq.s32.totalorder %s20, 0
    %p76 = por %p74, %p75
    %p77 = scmp.ne.s32.totalorder %s65, %s66
    %p78 = scmp.eq.s32.totalorder %s21, 1
    %p79 = por %p77, %p78
    %p81 = scmp.ne.s32.totalorder %s66, %s80
    %p82 = scmp.eq.s32.totalorder %s21, 0
    %p83 = por %p81, %p82
    %s85 = sadd.s32 %s84, 1
    %p88 = scmp.eq.s32.totalorder %s15, 1
    %p89 = scmp.ne.s32.totalorder %s84, %s86
    %p90 = scmp.eq.s32.totalorder %s15, 0
    %p91 = por %p89, %p90
    %p92 = scmp.ne.s32.totalorder %s84, %s86
    %p93 = scmp.eq.s32.totalorder %s20, 1
    %p94 = por %p92, %p93
    %p95 = scmp.ne.s32.totalorder %s86, %s87
    %p96 = scmp.eq.s32.totalorder %s20, 0
    %p97 = por %p95, %p96
    %p98 = scmp.ne.s32.totalorder %s86, %s87
    %p99 = scmp.eq.s32.totalorder %s21, 1
    %p100 = por %p98, %p99
    %p102 = scmp.ne.s32.totalorder %s87, %s101
    %p103 = scmp.eq.s32.totalorder %s21, 0
    %p104 = por %p102, %p103
    %s106 = sadd.s32 %s105, 1
    %p109 = scmp.eq.s32.totalorder %s15, 1
    %p110 = scmp.ne.s32.totalorder %s105, %s107
    %p111 = scmp.eq.s32.totalorder %s15, 0
    %p112 = por %p110, %p111
    %p113 = scmp.ne.s32.totalorder %s105, %s107
    %p114 = scmp.eq.s32.totalorder %s20, 1
    %p115 = por %p113, %p114
    %p116 = scmp.ne.s32.totalorder %s107, %s108
    %p117 = scmp.eq.s32.totalorder %s20, 0
    %p118 = por %p116, %p117
    %p119 = scmp.ne.s32.totalorder %s107, %s108
    %p120 = scmp.eq.s32.totalorder %s21, 1
    %p121 = por %p119, %p120
    %p123 = scmp.ne.s32.totalorder %s108, %s122
    %p124 = scmp.eq.s32.totalorder %s21, 0
    %p125 = por %p123, %p124
    %s127 = sadd.s32 %s126, 1
    %p130 = scmp.eq.s32.totalorder %s15, 1
    %p131 = scmp.ne.s32.totalorder %s126, %s128
    %p132 = scmp.eq.s32.totalorder %s15, 0
    %p133 = por %p131, %p132
    %p134 = scmp.ne.s32.totalorder %s126, %s128
    %p135 = scmp.eq.s32.totalorder %s20, 1
    %p136 = por %p134, %p135
    %p137 = scmp.ne.s32.totalorder %s128, %s129
    %p138 = scmp.eq.s32.totalorder %s20, 0
    %p139 = por %p137, %p138
    %p140 = scmp.ne.s32.totalorder %s128, %s129
    %p141 = scmp.eq.s32.totalorder %s21, 1
    %p142 = por %p140, %p141
    %p144 = scmp.ne.s32.totalorder %s129, %s143
    %p145 = scmp.eq.s32.totalorder %s21, 0
    %p146 = por %p144, %p145
    %s148 = sadd.s32 %s147, 1
    %p151 = scmp.eq.s32.totalorder %s15, 1
    %p152 = scmp.ne.s32.totalorder %s147, %s149
    %p153 = scmp.eq.s32.totalorder %s15, 0
    %p154 = por %p152, %p153
    %p155 = scmp.ne.s32.totalorder %s147, %s149
    %p156 = scmp.eq.s32.totalorder %s20, 1
    %p157 = por %p155, %p156
    %p158 = scmp.ne.s32.totalorder %s149, %s150
    %p159 = scmp.eq.s32.totalorder %s20, 0
    %p160 = por %p158, %p159
    %p161 = scmp.ne.s32.totalorder %s149, %s150
    %p162 = scmp.eq.s32.totalorder %s21, 1
    %p163 = por %p161, %p162
    %p165 = scmp.ne.s32.totalorder %s150, %s164
    %p166 = scmp.eq.s32.totalorder %s21, 0
    %p167 = por %p165, %p166
    %s169 = sadd.s32 %s168, 1
    %p172 = scmp.eq.s32.totalorder %s15, 1
    %p173 = scmp.ne.s32.totalorder %s168, %s170
    %p174 = scmp.eq.s32.totalorder %s15, 0
    %p175 = por %p173, %p174
    %p176 = scmp.ne.s32.totalorder %s168, %s170
    %p177 = scmp.eq.s32.totalorder %s20, 1
    %p178 = por %p176, %p177
    %p179 = scmp.ne.s32.totalorder %s170, %s171
    %p180 = scmp.eq.s32.totalorder %s20, 0
    %p181 = por %p179, %p180
    %p182 = scmp.ne.s32.totalorder %s170, %s171
    %p183 = scmp.eq.s32.totalorder %s21, 1
    %p184 = por %p182, %p183
    %p186 = scmp.ne.s32.totalorder %s171, %s185
    %p187 = scmp.eq.s32.totalorder %s21, 0
    %p188 = por %p186, %p187
    %s189 = ssub.s32 %s22, %s34
    %s190 = ssub.s32 %s23, %s30
    %s191 = sor.u32 %s189, %s190
    %p192 = scmp.eq.s32.totalorder %s191, 0
    %s194 = sadd.s32 %s193, 1
    %s195 = scalar_select %p192, %s193, %s194
    %p198 = pneg %p192
    %p199 = scmp.eq.s32.totalorder %s15, 1
    %p200 = por %p198, %p199
    %p201 = scmp.ne.s32.totalorder %s193, %s196
    %p202 = scmp.eq.s32.totalorder %s15, 0
    %p203 = por %p201, %p202
    %p204 = scmp.ne.s32.totalorder %s193, %s196
    %p205 = scmp.eq.s32.totalorder %s20, 1
    %p206 = por %p204, %p205
    %p207 = scmp.ne.s32.totalorder %s196, %s197
    %p208 = scmp.eq.s32.totalorder %s20, 0
    %p209 = por %p207, %p208
    %p210 = scmp.ne.s32.totalorder %s196, %s197
    %p211 = scmp.eq.s32.totalorder %s21, 1
    %p212 = por %p210, %p211
    %p214 = scmp.ne.s32.totalorder %s197, %s213
    %p215 = scmp.eq.s32.totalorder %s21, 0
    %p216 = por %p214, %p215
    %p217 = scmp.le.s32.totalorder 1, %s15
    %p218 = scmp.lt.s32.totalorder %s15, 3
    %p219 = pnand %p217, %p218
    %p220 = pneg %p219
    // Predicated region
    $region9: #{tpu_custom_call.1} parent=5 // pred_check
      _
    $region10: #{tpu_custom_call.1} parent=5 // pred_check_branch
      %222 = sbr.rel (%p219) target = $region12
    $region11: #{tpu_custom_call.1} parent=5 // pred_region
      %s223 = ssub.s32 %s15, 1
      // Predicated region
      $region13: #{tpu_custom_call.1} parent=11 // pred_check
        %p224 = pneg %p76
      $region14: #{tpu_custom_call.1} parent=11 // pred_check_branch
        %226 = sbr.rel (%p224) target = $region16
      $region15: #{tpu_custom_call.1} parent=11 // pred_region
        _
      $region16: #{tpu_custom_call.1} parent=11 // pred_fallthru
        _
      // Predicated region
      $region17: #{tpu_custom_call.1} parent=11 // pred_check
        %p227 = pneg %p97
      $region18: #{tpu_custom_call.1} parent=11 // pred_check_branch
        %229 = sbr.rel (%p227) target = $region20
      $region19: #{tpu_custom_call.1} parent=11 // pred_region
        _
      $region20: #{tpu_custom_call.1} parent=11 // pred_fallthru
        _
      // Predicated region
      $region21: #{tpu_custom_call.1} parent=11 // pred_check
        %p230 = pneg %p118
      $region22: #{tpu_custom_call.1} parent=11 // pred_check_branch
        %232 = sbr.rel (%p230) target = $region24
      $region23: #{tpu_custom_call.1} parent=11 // pred_region
        _
      $region24: #{tpu_custom_call.1} parent=11 // pred_fallthru
        _
      // Predicated region
      $region25: #{tpu_custom_call.1} parent=11 // pred_check
        %p233 = pneg %p139
      $region26: #{tpu_custom_call.1} parent=11 // pred_check_branch
        %235 = sbr.rel (%p233) target = $region28
      $region27: #{tpu_custom_call.1} parent=11 // pred_region
        _
      $region28: #{tpu_custom_call.1} parent=11 // pred_fallthru
        _
      // Predicated region
      $region29: #{tpu_custom_call.1} parent=11 // pred_check
        %p236 = pneg %p160
      $region30: #{tpu_custom_call.1} parent=11 // pred_check_branch
        %238 = sbr.rel (%p236) target = $region32
      $region31: #{tpu_custom_call.1} parent=11 // pred_region
        _
      $region32: #{tpu_custom_call.1} parent=11 // pred_fallthru
        _
      // Predicated region
      $region33: #{tpu_custom_call.1} parent=11 // pred_check
        %p239 = pneg %p181
      $region34: #{tpu_custom_call.1} parent=11 // pred_check_branch
        %241 = sbr.rel (%p239) target = $region36
      $region35: #{tpu_custom_call.1} parent=11 // pred_region
        _
      $region36: #{tpu_custom_call.1} parent=11 // pred_fallthru
        _
    $region12: #{tpu_custom_call.1} parent=5 // pred_fallthru
      _
    %p242 = scmp.lt.s32.totalorder %s15, 2
    // Predicated region
    $region37: #{tpu_custom_call.1} parent=5 // pred_check
      %p243 = pneg %p242
    $region38: #{tpu_custom_call.1} parent=5 // pred_check_branch
      %245 = sbr.rel (%p243) target = $region40
    $region39: #{tpu_custom_call.1} parent=5 // pred_region
      // Predicated region
      $region41: #{tpu_custom_call.1} parent=39 // pred_check
        %p246 = pneg %p49
      $region42: #{tpu_custom_call.1} parent=39 // pred_check_branch
        %248 = sbr.rel (%p246) target = $region44
      $region43: #{tpu_custom_call.1} parent=39 // pred_region
        %p249 = scmp.lt.s32.totalorder %s22, 1
        %s250 = scalar_select %p249, %s22, 1
        %p251 = scmp.lt.s32.totalorder %s23, 0
        %s252 = scalar_select %p251, %s23, 0
        %s253 = smul.addr %s252, 34
        %s254 = smul.addr %s250, 34
        %s255 = sadd.s32 %s253, %s254
        %s256 = smul.addr %s255, 8
        %s257 = scalar_lea.vmem %s0, %s256
      $region44: #{tpu_custom_call.1} parent=39 // pred_fallthru
        _
    $region40: #{tpu_custom_call.1} parent=5 // pred_fallthru
      _
    %p258 = scmp.le.s32.totalorder 1, %s15
    %p259 = scmp.lt.s32.totalorder %s15, 3
    %p260 = pnand %p258, %p259
    %p261 = pneg %p260
    // Predicated region
    $region45: #{tpu_custom_call.1} parent=5 // pred_check
      _
    $region46: #{tpu_custom_call.1} parent=5 // pred_check_branch
      %263 = sbr.rel (%p260) target = $region48
    $region47: #{tpu_custom_call.1} parent=5 // pred_region
      %s264 = ssub.s32 %s15, 1
      %p265 = scmp.lt.s32.totalorder %s24, 1
      %s266 = scalar_select %p265, %s24, 1
      %p267 = scmp.lt.s32.totalorder %s25, 0
      %s268 = scalar_select %p267, %s25, 0
      %s269 = smul.addr %s268, 34
      %s270 = smul.addr %s266, 34
      %s271 = sadd.s32 %s269, %s270
      %s272 = smul.addr %s271, 8
      %s273 = scalar_lea.vmem %s0, %s272
      %p274 = pneg %p55
      %p275 = pneg %p52
      %p276 = pneg %p76
      %p277 = pneg %p73
      %p278 = pneg %p97
      %p279 = pneg %p94
      %p280 = pneg %p118
      %p281 = pneg %p115
      %p282 = pneg %p139
      %p283 = pneg %p136
      %p284 = pneg %p160
      %p285 = pneg %p157
      %p286 = pneg %p181
      %p287 = pneg %p178
      %p288 = pneg %p209
      %p289 = pneg %p206
      %s290 = smul.u32 16, %s25
      %p291 = scmp.lt.s32.totalorder %s24, 1
      %s292 = scalar_select %p291, %s24, 1
      %p293 = scmp.lt.s32.totalorder %s290, 15
      %s294 = scalar_select %p293, %s290, 15
      %s295 = smul.addr %s294, 2
      %s296 = smul.addr %s292, 32
      %s297 = sadd.s32 %s295, %s296
      %s298 = smul.addr %s297, 8
      %s299 = scalar_lea.vmem %s7, %s298
      %p300 = scmp.lt.s32.totalorder %s24, 1
      %s301 = scalar_select %p300, %s24, 1
      %p302 = scmp.lt.s32.totalorder %s25, 0
      %s303 = scalar_select %p302, %s25, 0
      %s304 = smul.addr %s303, 34
      %s305 = smul.addr %s301, 34
      %s306 = sadd.s32 %s304, %s305
      %s307 = smul.addr %s306, 8
      %s308 = scalar_lea.vmem %s0, %s307
      %s309 = smul.u32 16, %s25
      %p310 = scmp.lt.s32.totalorder %s24, 1
      %s311 = scalar_select %p310, %s24, 1
      %p312 = scmp.lt.s32.totalorder %s309, 15
      %s313 = scalar_select %p312, %s309, 15
      %s314 = smul.addr %s313, 2
      %s315 = smul.addr %s311, 32
      %s316 = sadd.s32 %s314, %s315
      %s317 = smul.addr %s316, 8
      %s318 = scalar_lea.vmem %s7, %s317
      %s319 = smul.u32 16, %s25
      %v320 = vld [vmem:[%s308] sm:$0xff]
      %v321 = vld [vmem:[%s308 + $0x8] sm:$0xff]
      %v322 = vld [vmem:[%s308 + $0x10] sm:$0xff]
      %v323 = vld [vmem:[%s308 + $0x18] sm:$0xff]
      %v324 = vld [vmem:[%s308 + $0x20] sm:$0xff]
      %v325 = vld [vmem:[%s308 + $0x28] sm:$0xff]
      %v326 = vld [vmem:[%s308 + $0x30] sm:$0xff]
      %v327 = vld [vmem:[%s308 + $0x38] sm:$0xff]
      %v328 = vld [vmem:[%s308 + $0x40] sm:$0xff]
      %v329 = vld [vmem:[%s308 + $0x48] sm:$0xff]
      %v330 = vld [vmem:[%s308 + $0x50] sm:$0xff]
      %v331 = vld [vmem:[%s308 + $0x58] sm:$0xff]
      %v332 = vld [vmem:[%s308 + $0x60] sm:$0xff]
      %v333 = vld [vmem:[%s308 + $0x68] sm:$0xff]
      %v334 = vld [vmem:[%s308 + $0x70] sm:$0xff]
      %v335 = vld [vmem:[%s308 + $0x78] sm:$0xff]
      %v336 = vld [vmem:[%s308 + $0x80] sm:$0xff]
      %v337 = vld [vmem:[%s308 + $0x88] sm:$0xff]
      %v338 = vld [vmem:[%s308 + $0x90] sm:$0xff]
      %v339 = vld [vmem:[%s308 + $0x98] sm:$0xff]
      %v340 = vld [vmem:[%s308 + $0xa0] sm:$0xff]
      %v341 = vld [vmem:[%s308 + $0xa8] sm:$0xff]
      %v342 = vld [vmem:[%s308 + $0xb0] sm:$0xff]
      %v343 = vld [vmem:[%s308 + $0xb8] sm:$0xff]
      %v344 = vld [vmem:[%s308 + $0xc0] sm:$0xff]
      %v345 = vld [vmem:[%s308 + $0xc8] sm:$0xff]
      %v346 = vld [vmem:[%s308 + $0xd0] sm:$0xff]
      %v347 = vld [vmem:[%s308 + $0xd8] sm:$0xff]
      %v348 = vld [vmem:[%s308 + $0xe0] sm:$0xff]
      %v349 = vld [vmem:[%s308 + $0xe8] sm:$0xff]
      %v350 = vld [vmem:[%s308 + $0xf0] sm:$0xff]
      %v351 = vld [vmem:[%s308 + $0xf8] sm:$0xff]
      %v352 = vld [vmem:[%s308 + $0x100] sm:$0xff]
      %v353 = vld [vmem:[%s308 + $0x108] sm:$0xff]
      %v354 = vld [vmem:[%s1] sm:$0xff]
      %v355 = vld [vmem:[%s1 + $0x8] sm:$0xff]
      %v356 = vld [vmem:[%s1 + $0x10] sm:$0xff]
      %v357 = vld [vmem:[%s1 + $0x18] sm:$0xff]
      %v358 = vld [vmem:[%s1 + $0x20] sm:$0xff]
      %v359 = vld [vmem:[%s1 + $0x28] sm:$0xff]
      %v360 = vld [vmem:[%s1 + $0x30] sm:$0xff]
      %v361 = vld [vmem:[%s1 + $0x38] sm:$0xff]
      %v362 = vld [vmem:[%s1 + $0x40] sm:$0xff]
      %v363 = vld [vmem:[%s1 + $0x48] sm:$0xff]
      %v364 = vld [vmem:[%s1 + $0x50] sm:$0xff]
      %v365 = vld [vmem:[%s1 + $0x58] sm:$0xff]
      %v366 = vld [vmem:[%s1 + $0x60] sm:$0xff]
      %v367 = vld [vmem:[%s1 + $0x68] sm:$0xff]
      %v368 = vld [vmem:[%s1 + $0x70] sm:$0xff]
      %v369 = vld [vmem:[%s1 + $0x78] sm:$0xff]
      %v370 = vld [vmem:[%s1 + $0x80] sm:$0xf]
      %vm371 = vcmask 31744
      %v373 = vsel %vm371, %v321, 0
      %v376 = vsel %vm371, %v323, 0
      %v379 = vsel %vm371, %v325, 0
      %v382 = vsel %vm371, %v327, 0
      %v385 = vsel %vm371, %v329, 0
      %v388 = vsel %vm371, %v331, 0
      %v391 = vsel %vm371, %v333, 0
      %v394 = vsel %vm371, %v335, 0
      %v397 = vsel %vm371, %v337, 0
      %v400 = vsel %vm371, %v339, 0
      %v403 = vsel %vm371, %v341, 0
      %v406 = vsel %vm371, %v343, 0
      %v409 = vsel %vm371, %v345, 0
      %v412 = vsel %vm371, %v347, 0
      %v415 = vsel %vm371, %v349, 0
      %v418 = vsel %vm371, %v351, 0
      %v421 = vsel %vm371, %v353, 0
      %vm423 = vcmask 1043456
      %v425 = vsel %vm423, %v370, 0
      %427 = vmatpush.msra.mxu0 %v369
      %428 = vmatpush.msra.mxu0 %v368
      %429 = vmatpush.msra.mxu0 %v367
      %430 = vmatpush.msra.mxu0 %v366
      %431 = vmatpush.msra.mxu0 %v365
      %432 = vmatpush.msra.mxu0 %v364
      %433 = vmatpush.msra.mxu0 %v363
      %434 = vmatpush.msra.mxu0 %v362
      %435 = vmatpush.msra.mxu0 %v361
      %436 = vmatpush.msra.mxu0 %v360
      %437 = vmatpush.msra.mxu0 %v359
      %438 = vmatpush.msra.mxu0 %v358
      %439 = vmatpush.msra.mxu0 %v357
      %440 = vmatpush.msra.mxu0 %v356
      %441 = vmatpush.msra.mxu0 %v355
      %442 = vmatpush.msra.mxu0 %v354
      %443 = vmatmul.f32.gmra.mxu0 %v320
      %v444 = vpop.f32.mrf.mxu0
      %v445 = vadd.f32 0.0, %v444
      %446 = vmatmul.f32.gmra.mxu0 %v322
      %v447 = vpop.f32.mrf.mxu0
      %v448 = vadd.f32 0.0, %v447
      %449 = vmatmul.f32.gmra.mxu0 %v324
      %v450 = vpop.f32.mrf.mxu0
      %v451 = vadd.f32 0.0, %v450
      %452 = vmatmul.f32.gmra.mxu0 %v326
      %v453 = vpop.f32.mrf.mxu0
      %v454 = vadd.f32 0.0, %v453
      %455 = vmatmul.f32.gmra.mxu0 %v328
      %v456 = vpop.f32.mrf.mxu0
      %v457 = vadd.f32 0.0, %v456
      %458 = vmatmul.f32.gmra.mxu0 %v330
      %v459 = vpop.f32.mrf.mxu0
      %v460 = vadd.f32 0.0, %v459
      %461 = vmatmul.f32.gmra.mxu0 %v332
      %v462 = vpop.f32.mrf.mxu0
      %v463 = vadd.f32 0.0, %v462
      %464 = vmatmul.f32.gmra.mxu0 %v334
      %v465 = vpop.f32.mrf.mxu0
      %v466 = vadd.f32 0.0, %v465
      %467 = vmatmul.f32.gmra.mxu0 %v336
      %v468 = vpop.f32.mrf.mxu0
      %v469 = vadd.f32 0.0, %v468
      %470 = vmatmul.f32.gmra.mxu0 %v338
      %v471 = vpop.f32.mrf.mxu0
      %v472 = vadd.f32 0.0, %v471
      %473 = vmatmul.f32.gmra.mxu0 %v340
      %v474 = vpop.f32.mrf.mxu0
      %v475 = vadd.f32 0.0, %v474
      %476 = vmatmul.f32.gmra.mxu0 %v342
      %v477 = vpop.f32.mrf.mxu0
      %v478 = vadd.f32 0.0, %v477
      %479 = vmatmul.f32.gmra.mxu0 %v344
      %v480 = vpop.f32.mrf.mxu0
      %v481 = vadd.f32 0.0, %v480
      %482 = vmatmul.f32.gmra.mxu0 %v346
      %v483 = vpop.f32.mrf.mxu0
      %v484 = vadd.f32 0.0, %v483
      %485 = vmatmul.f32.gmra.mxu0 %v348
      %v486 = vpop.f32.mrf.mxu0
      %v487 = vadd.f32 0.0, %v486
      %488 = vmatmul.f32.gmra.mxu0 %v350
      %v489 = vpop.f32.mrf.mxu0
      %v490 = vadd.f32 0.0, %v489
      %491 = vmatmul.f32.gmra.mxu0 %v352
      %v492 = vpop.f32.mrf.mxu0
      %v493 = vadd.f32 0.0, %v492
      %494 = vdwg.mxu0
      %495 = vmatpush.msra.mxu0 0.0
      %496 = vmatpush.msra.mxu0 0.0
      %497 = vmatpush.msra.mxu0 0.0
      %498 = vmatpush.msra.mxu0 0.0
      %499 = vmatpush.msra.mxu0 0.0
      %500 = vmatpush.msra.mxu0 0.0
      %501 = vmatpush.msra.mxu0 0.0
      %502 = vmatpush.msra.mxu0 0.0
      %503 = vmatpush.msra.mxu0 0.0
      %504 = vmatpush.msra.mxu0 0.0
      %505 = vmatpush.msra.mxu0 0.0
      %506 = vmatpush.msra.mxu0 0.0
      %507 = vmatpush.msra.mxu0 0.0
      %508 = vmatpush.msra.mxu0 0.0
      %509 = vmatpush.msra.mxu0 0.0
      %510 = vmatpush.msra.mxu0 %v425
      %511 = vmatmul.f32.gmra.mxu0 %v373
      %v512 = vpop.f32.mrf.mxu0
      %v513 = vadd.f32 %v445, %v512
      %514 = vmatmul.f32.gmra.mxu0 %v376
      %v515 = vpop.f32.mrf.mxu0
      %v516 = vadd.f32 %v448, %v515
      %517 = vmatmul.f32.gmra.mxu0 %v379
      %v518 = vpop.f32.mrf.mxu0
      %v519 = vadd.f32 %v451, %v518
      %520 = vmatmul.f32.gmra.mxu0 %v382
      %v521 = vpop.f32.mrf.mxu0
      %v522 = vadd.f32 %v454, %v521
      %523 = vmatmul.f32.gmra.mxu0 %v385
      %v524 = vpop.f32.mrf.mxu0
      %v525 = vadd.f32 %v457, %v524
      %526 = vmatmul.f32.gmra.mxu0 %v388
      %v527 = vpop.f32.mrf.mxu0
      %v528 = vadd.f32 %v460, %v527
      %529 = vmatmul.f32.gmra.mxu0 %v391
      %v530 = vpop.f32.mrf.mxu0
      %v531 = vadd.f32 %v463, %v530
      %532 = vmatmul.f32.gmra.mxu0 %v394
      %v533 = vpop.f32.mrf.mxu0
      %v534 = vadd.f32 %v466, %v533
      %535 = vmatmul.f32.gmra.mxu0 %v397
      %v536 = vpop.f32.mrf.mxu0
      %v537 = vadd.f32 %v469, %v536
      %538 = vmatmul.f32.gmra.mxu0 %v400
      %v539 = vpop.f32.mrf.mxu0
      %v540 = vadd.f32 %v472, %v539
      %541 = vmatmul.f32.gmra.mxu0 %v403
      %v542 = vpop.f32.mrf.mxu0
      %v543 = vadd.f32 %v475, %v542
      %544 = vmatmul.f32.gmra.mxu0 %v406
      %v545 = vpop.f32.mrf.mxu0
      %v546 = vadd.f32 %v478, %v545
      %547 = vmatmul.f32.gmra.mxu0 %v409
      %v548 = vpop.f32.mrf.mxu0
      %v549 = vadd.f32 %v481, %v548
      %550 = vmatmul.f32.gmra.mxu0 %v412
      %v551 = vpop.f32.mrf.mxu0
      %v552 = vadd.f32 %v484, %v551
      %553 = vmatmul.f32.gmra.mxu0 %v415
      %v554 = vpop.f32.mrf.mxu0
      %v555 = vadd.f32 %v487, %v554
      %556 = vmatmul.f32.gmra.mxu0 %v418
      %v557 = vpop.f32.mrf.mxu0
      %v558 = vadd.f32 %v490, %v557
      %559 = vmatmul.f32.gmra.mxu0 %v421
      %v560 = vpop.f32.mrf.mxu0
      %v561 = vadd.f32 %v493, %v560
      %562 = vdwg.mxu0
      %v563 = vrot.slane %v513, 6
      %v564 = vrot.slane %v516, 6
      %v565 = vrot.slane %v519, 6
      %v566 = vrot.slane %v522, 6
      %v567 = vrot.slane %v525, 6
      %v568 = vrot.slane %v528, 6
      %v569 = vrot.slane %v531, 6
      %v570 = vrot.slane %v534, 6
      %v571 = vrot.slane %v537, 6
      %v572 = vrot.slane %v540, 6
      %v573 = vrot.slane %v543, 6
      %v574 = vrot.slane %v546, 6
      %v575 = vrot.slane %v549, 6
      %v576 = vrot.slane %v552, 6
      %v577 = vrot.slane %v555, 6
      %v578 = vrot.slane %v558, 6
      %v579 = vrot.slane %v561, 6
      %v580 = vlaneseq
      %v581 = vshrl.u32 %v580, 7
      %vm582 = vcmp.lt.s32.totalorder %v581, 2
      %v583 = vsel %vm582, %v577, %v578
      %v584 = vsel %vm582, %v576, %v577
      %v585 = vsel %vm582, %v575, %v576
      %v586 = vsel %vm582, %v574, %v575
      %v587 = vsel %vm582, %v573, %v574
      %v588 = vsel %vm582, %v572, %v573
      %v589 = vsel %vm582, %v571, %v572
      %v590 = vsel %vm582, %v570, %v571
      %v591 = vsel %vm582, %v569, %v570
      %v592 = vsel %vm582, %v568, %v569
      %v593 = vsel %vm582, %v567, %v568
      %v594 = vsel %vm582, %v566, %v567
      %v595 = vsel %vm582, %v565, %v566
      %v596 = vsel %vm582, %v564, %v565
      %v597 = vsel %vm582, %v563, %v564
      %v598 = vsel %vm582, %v579, %v563
      %616 = vrot.lane.b32.xlu0 %v513, 112
      %v617 = vpop.permute.xlu0 %616
      %618 = vrot.lane.b32.xlu0 %v516, 112
      %v619 = vpop.permute.xlu0 %618
      %620 = vrot.lane.b32.xlu0 %v519, 112
      %v621 = vpop.permute.xlu0 %620
      %622 = vrot.lane.b32.xlu0 %v522, 112
      %v623 = vpop.permute.xlu0 %622
      %624 = vrot.lane.b32.xlu0 %v525, 112
      %v625 = vpop.permute.xlu0 %624
      %626 = vrot.lane.b32.xlu0 %v528, 112
      %v627 = vpop.permute.xlu0 %626
      %628 = vrot.lane.b32.xlu0 %v531, 112
      %v629 = vpop.permute.xlu0 %628
      %630 = vrot.lane.b32.xlu0 %v534, 112
      %v631 = vpop.permute.xlu0 %630
      %632 = vrot.lane.b32.xlu0 %v537, 112
      %v633 = vpop.permute.xlu0 %632
      %634 = vrot.lane.b32.xlu0 %v540, 112
      %v635 = vpop.permute.xlu0 %634
      %636 = vrot.lane.b32.xlu0 %v543, 112
      %v637 = vpop.permute.xlu0 %636
      %638 = vrot.lane.b32.xlu0 %v546, 112
      %v639 = vpop.permute.xlu0 %638
      %640 = vrot.lane.b32.xlu0 %v549, 112
      %v641 = vpop.permute.xlu0 %640
      %642 = vrot.lane.b32.xlu0 %v552, 112
      %v643 = vpop.permute.xlu0 %642
      %644 = vrot.lane.b32.xlu0 %v555, 112
      %v645 = vpop.permute.xlu0 %644
      %646 = vrot.lane.b32.xlu0 %v558, 112
      %v647 = vpop.permute.xlu0 %646
      %648 = vrot.lane.b32.xlu0 %v561, 112
      %v649 = vpop.permute.xlu0 %648
      %v667 = vrot.slane %v617, 7
      %v668 = vrot.slane %v619, 7
      %v669 = vrot.slane %v621, 7
      %v670 = vrot.slane %v623, 7
      %v671 = vrot.slane %v625, 7
      %v672 = vrot.slane %v627, 7
      %v673 = vrot.slane %v629, 7
      %v674 = vrot.slane %v631, 7
      %v675 = vrot.slane %v633, 7
      %v676 = vrot.slane %v635, 7
      %v677 = vrot.slane %v637, 7
      %v678 = vrot.slane %v639, 7
      %v679 = vrot.slane %v641, 7
      %v680 = vrot.slane %v643, 7
      %v681 = vrot.slane %v645, 7
      %v682 = vrot.slane %v647, 7
      %v683 = vrot.slane %v649, 7
      %vm684 = vcmp.lt.s32.totalorder %v581, 1
      %v685 = vsel %vm684, %v681, %v682
      %v686 = vsel %vm684, %v680, %v681
      %v687 = vsel %vm684, %v679, %v680
      %v688 = vsel %vm684, %v678, %v679
      %v689 = vsel %vm684, %v677, %v678
      %v690 = vsel %vm684, %v676, %v677
      %v691 = vsel %vm684, %v675, %v676
      %v692 = vsel %vm684, %v674, %v675
      %v693 = vsel %vm684, %v673, %v674
      %v694 = vsel %vm684, %v672, %v673
      %v695 = vsel %vm684, %v671, %v672
      %v696 = vsel %vm684, %v670, %v671
      %v697 = vsel %vm684, %v669, %v670
      %v698 = vsel %vm684, %v668, %v669
      %v699 = vsel %vm684, %v667, %v668
      %v700 = vsel %vm684, %v683, %v667
      %v701 = vadd.f32 %v598, %v700
      %v702 = vadd.f32 %v597, %v699
      %v703 = vadd.f32 %v596, %v698
      %v704 = vadd.f32 %v595, %v697
      %v705 = vadd.f32 %v594, %v696
      %v706 = vadd.f32 %v593, %v695
      %v707 = vadd.f32 %v592, %v694
      %v708 = vadd.f32 %v591, %v693
      %v709 = vadd.f32 %v590, %v692
      %v710 = vadd.f32 %v589, %v691
      %v711 = vadd.f32 %v588, %v690
      %v712 = vadd.f32 %v587, %v689
      %v713 = vadd.f32 %v586, %v688
      %v714 = vadd.f32 %v585, %v687
      %v715 = vadd.f32 %v584, %v686
      %v716 = vadd.f32 %v583, %v685
      %717 = vrot.lane.b32.xlu0 %v513, 96
      %v718 = vpop.permute.xlu0 %717
      %719 = vrot.lane.b32.xlu0 %v516, 96
      %v720 = vpop.permute.xlu0 %719
      %721 = vrot.lane.b32.xlu0 %v519, 96
      %v722 = vpop.permute.xlu0 %721
      %723 = vrot.lane.b32.xlu0 %v522, 96
      %v724 = vpop.permute.xlu0 %723
      %725 = vrot.lane.b32.xlu0 %v525, 96
      %v726 = vpop.permute.xlu0 %725
      %727 = vrot.lane.b32.xlu0 %v528, 96
      %v728 = vpop.permute.xlu0 %727
      %729 = vrot.lane.b32.xlu0 %v531, 96
      %v730 = vpop.permute.xlu0 %729
      %731 = vrot.lane.b32.xlu0 %v534, 96
      %v732 = vpop.permute.xlu0 %731
      %733 = vrot.lane.b32.xlu0 %v537, 96
      %v734 = vpop.permute.xlu0 %733
      %735 = vrot.lane.b32.xlu0 %v540, 96
      %v736 = vpop.permute.xlu0 %735
      %737 = vrot.lane.b32.xlu0 %v543, 96
      %v738 = vpop.permute.xlu0 %737
      %739 = vrot.lane.b32.xlu0 %v546, 96
      %v740 = vpop.permute.xlu0 %739
      %741 = vrot.lane.b32.xlu0 %v549, 96
      %v742 = vpop.permute.xlu0 %741
      %743 = vrot.lane.b32.xlu0 %v552, 96
      %v744 = vpop.permute.xlu0 %743
      %745 = vrot.lane.b32.xlu0 %v555, 96
      %v746 = vpop.permute.xlu0 %745
      %747 = vrot.lane.b32.xlu0 %v558, 96
      %v748 = vpop.permute.xlu0 %747
      %v765 = vadd.f32 %v701, %v718
      %v766 = vadd.f32 %v702, %v720
      %v767 = vadd.f32 %v703, %v722
      %v768 = vadd.f32 %v704, %v724
      %v769 = vadd.f32 %v705, %v726
      %v770 = vadd.f32 %v706, %v728
      %v771 = vadd.f32 %v707, %v730
      %v772 = vadd.f32 %v708, %v732
      %v773 = vadd.f32 %v709, %v734
      %v774 = vadd.f32 %v710, %v736
      %v775 = vadd.f32 %v711, %v738
      %v776 = vadd.f32 %v712, %v740
      %v777 = vadd.f32 %v713, %v742
      %v778 = vadd.f32 %v714, %v744
      %v779 = vadd.f32 %v715, %v746
      %v780 = vadd.f32 %v716, %v748
      %781 = vrot.lane.b32.xlu0 %v513, 80
      %v782 = vpop.permute.xlu0 %781
      %783 = vrot.lane.b32.xlu0 %v516, 80
      %v784 = vpop.permute.xlu0 %783
      %785 = vrot.lane.b32.xlu0 %v519, 80
      %v786 = vpop.permute.xlu0 %785
      %787 = vrot.lane.b32.xlu0 %v522, 80
      %v788 = vpop.permute.xlu0 %787
      %789 = vrot.lane.b32.xlu0 %v525, 80
      %v790 = vpop.permute.xlu0 %789
      %791 = vrot.lane.b32.xlu0 %v528, 80
      %v792 = vpop.permute.xlu0 %791
      %793 = vrot.lane.b32.xlu0 %v531, 80
      %v794 = vpop.permute.xlu0 %793
      %795 = vrot.lane.b32.xlu0 %v534, 80
      %v796 = vpop.permute.xlu0 %795
      %797 = vrot.lane.b32.xlu0 %v537, 80
      %v798 = vpop.permute.xlu0 %797
      %799 = vrot.lane.b32.xlu0 %v540, 80
      %v800 = vpop.permute.xlu0 %799
      %801 = vrot.lane.b32.xlu0 %v543, 80
      %v802 = vpop.permute.xlu0 %801
      %803 = vrot.lane.b32.xlu0 %v546, 80
      %v804 = vpop.permute.xlu0 %803
      %805 = vrot.lane.b32.xlu0 %v549, 80
      %v806 = vpop.permute.xlu0 %805
      %807 = vrot.lane.b32.xlu0 %v552, 80
      %v808 = vpop.permute.xlu0 %807
      %809 = vrot.lane.b32.xlu0 %v555, 80
      %v810 = vpop.permute.xlu0 %809
      %811 = vrot.lane.b32.xlu0 %v558, 80
      %v812 = vpop.permute.xlu0 %811
      %813 = vrot.lane.b32.xlu0 %v561, 80
      %v814 = vpop.permute.xlu0 %813
      %v832 = vrot.slane %v782, 1
      %v833 = vrot.slane %v784, 1
      %v834 = vrot.slane %v786, 1
      %v835 = vrot.slane %v788, 1
      %v836 = vrot.slane %v790, 1
      %v837 = vrot.slane %v792, 1
      %v838 = vrot.slane %v794, 1
      %v839 = vrot.slane %v796, 1
      %v840 = vrot.slane %v798, 1
      %v841 = vrot.slane %v800, 1
      %v842 = vrot.slane %v802, 1
      %v843 = vrot.slane %v804, 1
      %v844 = vrot.slane %v806, 1
      %v845 = vrot.slane %v808, 1
      %v846 = vrot.slane %v810, 1
      %v847 = vrot.slane %v812, 1
      %v848 = vrot.slane %v814, 1
      %vm849 = vcmp.lt.s32.totalorder %v581, 7
      %v850 = vsel %vm849, %v847, %v848
      %v851 = vsel %vm849, %v846, %v847
      %v852 = vsel %vm849, %v845, %v846
      %v853 = vsel %vm849, %v844, %v845
      %v854 = vsel %vm849, %v843, %v844
      %v855 = vsel %vm849, %v842, %v843
      %v856 = vsel %vm849, %v841, %v842
      %v857 = vsel %vm849, %v840, %v841
      %v858 = vsel %vm849, %v839, %v840
      %v859 = vsel %vm849, %v838, %v839
      %v860 = vsel %vm849, %v837, %v838
      %v861 = vsel %vm849, %v836, %v837
      %v862 = vsel %vm849, %v835, %v836
      %v863 = vsel %vm849, %v834, %v835
      %v864 = vsel %vm849, %v833, %v834
      %v865 = vsel %vm849, %v832, %v833
      %v866 = vadd.f32 %v765, %v865
      %v867 = vadd.f32 %v766, %v864
      %v868 = vadd.f32 %v767, %v863
      %v869 = vadd.f32 %v768, %v862
      %v870 = vadd.f32 %v769, %v861
      %v871 = vadd.f32 %v770, %v860
      %v872 = vadd.f32 %v771, %v859
      %v873 = vadd.f32 %v772, %v858
      %v874 = vadd.f32 %v773, %v857
      %v875 = vadd.f32 %v774, %v856
      %v876 = vadd.f32 %v775, %v855
      %v877 = vadd.f32 %v776, %v854
      %v878 = vadd.f32 %v777, %v853
      %v879 = vadd.f32 %v778, %v852
      %v880 = vadd.f32 %v779, %v851
      %v881 = vadd.f32 %v780, %v850
      %882 = vrot.lane.b32.xlu0 %v513, 64
      %v883 = vpop.permute.xlu0 %882
      %884 = vrot.lane.b32.xlu0 %v516, 64
      %v885 = vpop.permute.xlu0 %884
      %886 = vrot.lane.b32.xlu0 %v519, 64
      %v887 = vpop.permute.xlu0 %886
      %888 = vrot.lane.b32.xlu0 %v522, 64
      %v889 = vpop.permute.xlu0 %888
      %890 = vrot.lane.b32.xlu0 %v525, 64
      %v891 = vpop.permute.xlu0 %890
      %892 = vrot.lane.b32.xlu0 %v528, 64
      %v893 = vpop.permute.xlu0 %892
      %894 = vrot.lane.b32.xlu0 %v531, 64
      %v895 = vpop.permute.xlu0 %894
      %896 = vrot.lane.b32.xlu0 %v534, 64
      %v897 = vpop.permute.xlu0 %896
      %898 = vrot.lane.b32.xlu0 %v537, 64
      %v899 = vpop.permute.xlu0 %898
      %900 = vrot.lane.b32.xlu0 %v540, 64
      %v901 = vpop.permute.xlu0 %900
      %902 = vrot.lane.b32.xlu0 %v543, 64
      %v903 = vpop.permute.xlu0 %902
      %904 = vrot.lane.b32.xlu0 %v546, 64
      %v905 = vpop.permute.xlu0 %904
      %906 = vrot.lane.b32.xlu0 %v549, 64
      %v907 = vpop.permute.xlu0 %906
      %908 = vrot.lane.b32.xlu0 %v552, 64
      %v909 = vpop.permute.xlu0 %908
      %910 = vrot.lane.b32.xlu0 %v555, 64
      %v911 = vpop.permute.xlu0 %910
      %912 = vrot.lane.b32.xlu0 %v558, 64
      %v913 = vpop.permute.xlu0 %912
      %914 = vrot.lane.b32.xlu0 %v561, 64
      %v915 = vpop.permute.xlu0 %914
      %v933 = vrot.slane %v883, 2
      %v934 = vrot.slane %v885, 2
      %v935 = vrot.slane %v887, 2
      %v936 = vrot.slane %v889, 2
      %v937 = vrot.slane %v891, 2
      %v938 = vrot.slane %v893, 2
      %v939 = vrot.slane %v895, 2
      %v940 = vrot.slane %v897, 2
      %v941 = vrot.slane %v899, 2
      %v942 = vrot.slane %v901, 2
      %v943 = vrot.slane %v903, 2
      %v944 = vrot.slane %v905, 2
      %v945 = vrot.slane %v907, 2
      %v946 = vrot.slane %v909, 2
      %v947 = vrot.slane %v911, 2
      %v948 = vrot.slane %v913, 2
      %v949 = vrot.slane %v915, 2
      %vm950 = vcmp.lt.s32.totalorder %v581, 6
      %v951 = vsel %vm950, %v948, %v949
      %v952 = vsel %vm950, %v947, %v948
      %v953 = vsel %vm950, %v946, %v947
      %v954 = vsel %vm950, %v945, %v946
      %v955 = vsel %vm950, %v944, %v945
      %v956 = vsel %vm950, %v943, %v944
      %v957 = vsel %vm950, %v942, %v943
      %v958 = vsel %vm950, %v941, %v942
      %v959 = vsel %vm950, %v940, %v941
      %v960 = vsel %vm950, %v939, %v940
      %v961 = vsel %vm950, %v938, %v939
      %v962 = vsel %vm950, %v937, %v938
      %v963 = vsel %vm950, %v936, %v937
      %v964 = vsel %vm950, %v935, %v936
      %v965 = vsel %vm950, %v934, %v935
      %v966 = vsel %vm950, %v933, %v934
      %v967 = vadd.f32 %v866, %v966
      %v968 = vadd.f32 %v867, %v965
      %v969 = vadd.f32 %v868, %v964
      %v970 = vadd.f32 %v869, %v963
      %v971 = vadd.f32 %v870, %v962
      %v972 = vadd.f32 %v871, %v961
      %v973 = vadd.f32 %v872, %v960
      %v974 = vadd.f32 %v873, %v959
      %v975 = vadd.f32 %v874, %v958
      %v976 = vadd.f32 %v875, %v957
      %v977 = vadd.f32 %v876, %v956
      %v978 = vadd.f32 %v877, %v955
      %v979 = vadd.f32 %v878, %v954
      %v980 = vadd.f32 %v879, %v953
      %v981 = vadd.f32 %v880, %v952
      %v982 = vadd.f32 %v881, %v951
      %v983 = vld [vmem:[%s2] sm:$0x1]
      %v985 = vperm.slane %v983, 0
      %v987 = vadd.f32 %v967, %v985
      %v988 = vadd.f32 %v968, %v985
      %v989 = vadd.f32 %v969, %v985
      %v990 = vadd.f32 %v970, %v985
      %v991 = vadd.f32 %v971, %v985
      %v992 = vadd.f32 %v972, %v985
      %v993 = vadd.f32 %v973, %v985
      %v994 = vadd.f32 %v974, %v985
      %v995 = vadd.f32 %v975, %v985
      %v996 = vadd.f32 %v976, %v985
      %v997 = vadd.f32 %v977, %v985
      %v998 = vadd.f32 %v978, %v985
      %v999 = vadd.f32 %v979, %v985
      %v1000 = vadd.f32 %v980, %v985
      %v1001 = vadd.f32 %v981, %v985
      %v1002 = vadd.f32 %v982, %v985
      %v1003 = vmax.f32 %v987, 0.0
      %v1004 = vmax.f32 %v988, 0.0
      %v1005 = vmax.f32 %v989, 0.0
      %v1006 = vmax.f32 %v990, 0.0
      %v1007 = vmax.f32 %v991, 0.0
      %v1008 = vmax.f32 %v992, 0.0
      %v1009 = vmax.f32 %v993, 0.0
      %v1010 = vmax.f32 %v994, 0.0
      %v1011 = vmax.f32 %v995, 0.0
      %v1012 = vmax.f32 %v996, 0.0
      %v1013 = vmax.f32 %v997, 0.0
      %v1014 = vmax.f32 %v998, 0.0
      %v1015 = vmax.f32 %v999, 0.0
      %v1016 = vmax.f32 %v1000, 0.0
      %v1017 = vmax.f32 %v1001, 0.0
      %v1018 = vmax.f32 %v1002, 0.0
      %v1019 = vld [vmem:[%s3] sm:$0xff]
      %v1020 = vld [vmem:[%s3 + $0x8] sm:$0xff]
      %v1021 = vld [vmem:[%s4] sm:$0x1]
      %v1023 = vperm.slane %v1021, 0
      %vm1025 = vcmask 130048
      %v1027 = vsel %vm1025, %v1003, 0
      %v1030 = vsel %vm1025, %v1004, 0
      %v1033 = vsel %vm1025, %v1005, 0
      %v1036 = vsel %vm1025, %v1006, 0
      %v1039 = vsel %vm1025, %v1007, 0
      %v1042 = vsel %vm1025, %v1008, 0
      %v1045 = vsel %vm1025, %v1009, 0
      %v1048 = vsel %vm1025, %v1010, 0
      %v1051 = vsel %vm1025, %v1011, 0
      %v1054 = vsel %vm1025, %v1012, 0
      %v1057 = vsel %vm1025, %v1013, 0
      %v1060 = vsel %vm1025, %v1014, 0
      %v1063 = vsel %vm1025, %v1015, 0
      %v1066 = vsel %vm1025, %v1016, 0
      %v1069 = vsel %vm1025, %v1017, 0
      %v1072 = vsel %vm1025, %v1018, 0
      %1074 = vmatpush.msra.mxu0 0.0
      %1075 = vmatpush.msra.mxu0 0.0
      %1076 = vmatpush.msra.mxu0 0.0
      %1077 = vmatpush.msra.mxu0 0.0
      %1078 = vmatpush.msra.mxu0 0.0
      %1079 = vmatpush.msra.mxu0 0.0
      %1080 = vmatpush.msra.mxu0 0.0
      %1081 = vmatpush.msra.mxu0 0.0
      %1082 = vmatpush.msra.mxu0 0.0
      %1083 = vmatpush.msra.mxu0 0.0
      %1084 = vmatpush.msra.mxu0 0.0
      %1085 = vmatpush.msra.mxu0 0.0
      %1086 = vmatpush.msra.mxu0 0.0
      %1087 = vmatpush.msra.mxu0 0.0
      %1088 = vmatpush.msra.mxu0 %v1020
      %1089 = vmatpush.msra.mxu0 %v1019
      %1090 = vmatmul.f32.gmra.mxu0 %v1027
      %v1091 = vpop.f32.mrf.mxu0
      %v1092 = vadd.f32 %v1023, %v1091
      %1093 = vmatmul.f32.gmra.mxu0 %v1030
      %v1094 = vpop.f32.mrf.mxu0
      %v1095 = vadd.f32 %v1023, %v1094
      %1096 = vmatmul.f32.gmra.mxu0 %v1033
      %v1097 = vpop.f32.mrf.mxu0
      %v1098 = vadd.f32 %v1023, %v1097
      %1099 = vmatmul.f32.gmra.mxu0 %v1036
      %v1100 = vpop.f32.mrf.mxu0
      %v1101 = vadd.f32 %v1023, %v1100
      %1102 = vmatmul.f32.gmra.mxu0 %v1039
      %v1103 = vpop.f32.mrf.mxu0
      %v1104 = vadd.f32 %v1023, %v1103
      %1105 = vmatmul.f32.gmra.mxu0 %v1042
      %v1106 = vpop.f32.mrf.mxu0
      %v1107 = vadd.f32 %v1023, %v1106
      %1108 = vmatmul.f32.gmra.mxu0 %v1045
      %v1109 = vpop.f32.mrf.mxu0
      %v1110 = vadd.f32 %v1023, %v1109
      %1111 = vmatmul.f32.gmra.mxu0 %v1048
      %v1112 = vpop.f32.mrf.mxu0
      %v1113 = vadd.f32 %v1023, %v1112
      %1114 = vmatmul.f32.gmra.mxu0 %v1051
      %v1115 = vpop.f32.mrf.mxu0
      %v1116 = vadd.f32 %v1023, %v1115
      %1117 = vmatmul.f32.gmra.mxu0 %v1054
      %v1118 = vpop.f32.mrf.mxu0
      %v1119 = vadd.f32 %v1023, %v1118
      %1120 = vmatmul.f32.gmra.mxu0 %v1057
      %v1121 = vpop.f32.mrf.mxu0
      %v1122 = vadd.f32 %v1023, %v1121
      %1123 = vmatmul.f32.gmra.mxu0 %v1060
      %v1124 = vpop.f32.mrf.mxu0
      %v1125 = vadd.f32 %v1023, %v1124
      %1126 = vmatmul.f32.gmra.mxu0 %v1063
      %v1127 = vpop.f32.mrf.mxu0
      %v1128 = vadd.f32 %v1023, %v1127
      %1129 = vmatmul.f32.gmra.mxu0 %v1066
      %v1130 = vpop.f32.mrf.mxu0
      %v1131 = vadd.f32 %v1023, %v1130
      %1132 = vmatmul.f32.gmra.mxu0 %v1069
      %v1133 = vpop.f32.mrf.mxu0
      %v1134 = vadd.f32 %v1023, %v1133
      %1135 = vmatmul.f32.gmra.mxu0 %v1072
      %v1136 = vpop.f32.mrf.mxu0
      %v1137 = vadd.f32 %v1023, %v1136
      %1138 = vdwg.mxu0
      %v1139 = vmax.f32 %v1092, 0.0
      %v1140 = vmax.f32 %v1095, 0.0
      %v1141 = vmax.f32 %v1098, 0.0
      %v1142 = vmax.f32 %v1101, 0.0
      %v1143 = vmax.f32 %v1104, 0.0
      %v1144 = vmax.f32 %v1107, 0.0
      %v1145 = vmax.f32 %v1110, 0.0
      %v1146 = vmax.f32 %v1113, 0.0
      %v1147 = vmax.f32 %v1116, 0.0
      %v1148 = vmax.f32 %v1119, 0.0
      %v1149 = vmax.f32 %v1122, 0.0
      %v1150 = vmax.f32 %v1125, 0.0
      %v1151 = vmax.f32 %v1128, 0.0
      %v1152 = vmax.f32 %v1131, 0.0
      %v1153 = vmax.f32 %v1134, 0.0
      %v1154 = vmax.f32 %v1137, 0.0
      %v1155 = vld [vmem:[%s5] sm:$0xff]
      %v1156 = vld [vmem:[%s5 + $0x8] sm:$0xff]
      %v1158 = vsel %vm1025, %v1139, 0
      %v1161 = vsel %vm1025, %v1140, 0
      %v1164 = vsel %vm1025, %v1141, 0
      %v1167 = vsel %vm1025, %v1142, 0
      %v1170 = vsel %vm1025, %v1143, 0
      %v1173 = vsel %vm1025, %v1144, 0
      %v1176 = vsel %vm1025, %v1145, 0
      %v1179 = vsel %vm1025, %v1146, 0
      %v1182 = vsel %vm1025, %v1147, 0
      %v1185 = vsel %vm1025, %v1148, 0
      %v1188 = vsel %vm1025, %v1149, 0
      %v1191 = vsel %vm1025, %v1150, 0
      %v1194 = vsel %vm1025, %v1151, 0
      %v1197 = vsel %vm1025, %v1152, 0
      %v1200 = vsel %vm1025, %v1153, 0
      %v1203 = vsel %vm1025, %v1154, 0
      %1205 = vmatpush.msra.mxu0 0.0
      %1206 = vmatpush.msra.mxu0 0.0
      %1207 = vmatpush.msra.mxu0 0.0
      %1208 = vmatpush.msra.mxu0 0.0
      %1209 = vmatpush.msra.mxu0 0.0
      %1210 = vmatpush.msra.mxu0 0.0
      %1211 = vmatpush.msra.mxu0 0.0
      %1212 = vmatpush.msra.mxu0 0.0
      %1213 = vmatpush.msra.mxu0 0.0
      %1214 = vmatpush.msra.mxu0 0.0
      %1215 = vmatpush.msra.mxu0 0.0
      %1216 = vmatpush.msra.mxu0 0.0
      %1217 = vmatpush.msra.mxu0 0.0
      %1218 = vmatpush.msra.mxu0 0.0
      %1219 = vmatpush.msra.mxu0 %v1156
      %1220 = vmatpush.msra.mxu0 %v1155
      %1221 = vmatmul.f32.gmra.mxu0 %v1158
      %v1222 = vpop.f32.mrf.mxu0
      %v1223 = vadd.f32 0.0, %v1222
      %1224 = vmatmul.f32.gmra.mxu0 %v1161
      %v1225 = vpop.f32.mrf.mxu0
      %v1226 = vadd.f32 0.0, %v1225
      %1227 = vmatmul.f32.gmra.mxu0 %v1164
      %v1228 = vpop.f32.mrf.mxu0
      %v1229 = vadd.f32 0.0, %v1228
      %1230 = vmatmul.f32.gmra.mxu0 %v1167
      %v1231 = vpop.f32.mrf.mxu0
      %v1232 = vadd.f32 0.0, %v1231
      %1233 = vmatmul.f32.gmra.mxu0 %v1170
      %v1234 = vpop.f32.mrf.mxu0
      %v1235 = vadd.f32 0.0, %v1234
      %1236 = vmatmul.f32.gmra.mxu0 %v1173
      %v1237 = vpop.f32.mrf.mxu0
      %v1238 = vadd.f32 0.0, %v1237
      %1239 = vmatmul.f32.gmra.mxu0 %v1176
      %v1240 = vpop.f32.mrf.mxu0
      %v1241 = vadd.f32 0.0, %v1240
      %1242 = vmatmul.f32.gmra.mxu0 %v1179
      %v1243 = vpop.f32.mrf.mxu0
      %v1244 = vadd.f32 0.0, %v1243
      %1245 = vmatmul.f32.gmra.mxu0 %v1182
      %v1246 = vpop.f32.mrf.mxu0
      %v1247 = vadd.f32 0.0, %v1246
      %1248 = vmatmul.f32.gmra.mxu0 %v1185
      %v1249 = vpop.f32.mrf.mxu0
      %v1250 = vadd.f32 0.0, %v1249
      %1251 = vmatmul.f32.gmra.mxu0 %v1188
      %v1252 = vpop.f32.mrf.mxu0
      %v1253 = vadd.f32 0.0, %v1252
      %1254 = vmatmul.f32.gmra.mxu0 %v1191
      %v1255 = vpop.f32.mrf.mxu0
      %v1256 = vadd.f32 0.0, %v1255
      %1257 = vmatmul.f32.gmra.mxu0 %v1194
      %v1258 = vpop.f32.mrf.mxu0
      %v1259 = vadd.f32 0.0, %v1258
      %1260 = vmatmul.f32.gmra.mxu0 %v1197
      %v1261 = vpop.f32.mrf.mxu0
      %v1262 = vadd.f32 0.0, %v1261
      %1263 = vmatmul.f32.gmra.mxu0 %v1200
      %v1264 = vpop.f32.mrf.mxu0
      %v1265 = vadd.f32 0.0, %v1264
      %1266 = vmatmul.f32.gmra.mxu0 %v1203
      %v1267 = vpop.f32.mrf.mxu0
      %v1268 = vadd.f32 0.0, %v1267
      %1269 = vdwg.mxu0
      %v1270 = vld [vmem:[#allocation2] sm:$0x1]
      %v1272 = vperm.slane %v1270, 0
      %v1274 = vadd.f32 %v1223, %v1272
      %v1275 = vadd.f32 %v1226, %v1272
      %v1276 = vadd.f32 %v1229, %v1272
      %v1277 = vadd.f32 %v1232, %v1272
      %v1278 = vadd.f32 %v1235, %v1272
      %v1279 = vadd.f32 %v1238, %v1272
      %v1280 = vadd.f32 %v1241, %v1272
      %v1281 = vadd.f32 %v1244, %v1272
      %v1282 = vadd.f32 %v1247, %v1272
      %v1283 = vadd.f32 %v1250, %v1272
      %v1284 = vadd.f32 %v1253, %v1272
      %v1285 = vadd.f32 %v1256, %v1272
      %v1286 = vadd.f32 %v1259, %v1272
      %v1287 = vadd.f32 %v1262, %v1272
      %v1288 = vadd.f32 %v1265, %v1272
      %v1289 = vadd.f32 %v1268, %v1272
      %v1290 = vxor.u32 %v1274, 2147483648
      %v1291 = vxor.u32 %v1275, 2147483648
      %v1292 = vxor.u32 %v1276, 2147483648
      %v1293 = vxor.u32 %v1277, 2147483648
      %v1294 = vxor.u32 %v1278, 2147483648
      %v1295 = vxor.u32 %v1279, 2147483648
      %v1296 = vxor.u32 %v1280, 2147483648
      %v1297 = vxor.u32 %v1281, 2147483648
      %v1298 = vxor.u32 %v1282, 2147483648
      %v1299 = vxor.u32 %v1283, 2147483648
      %v1300 = vxor.u32 %v1284, 2147483648
      %v1301 = vxor.u32 %v1285, 2147483648
      %v1302 = vxor.u32 %v1286, 2147483648
      %v1303 = vxor.u32 %v1287, 2147483648
      %v1304 = vxor.u32 %v1288, 2147483648
      %v1305 = vxor.u32 %v1289, 2147483648
      %v1306 = vmul.f32 %v1290, 1.442695
      %v1307 = vpow.pop %v1306
      %v1308 = vmul.f32 %v1291, 1.442695
      %v1309 = vpow.pop %v1308
      %v1310 = vmul.f32 %v1292, 1.442695
      %v1311 = vpow.pop %v1310
      %v1312 = vmul.f32 %v1293, 1.442695
      %v1313 = vpow.pop %v1312
      %v1314 = vmul.f32 %v1294, 1.442695
      %v1315 = vpow.pop %v1314
      %v1316 = vmul.f32 %v1295, 1.442695
      %v1317 = vpow.pop %v1316
      %v1318 = vmul.f32 %v1296, 1.442695
      %v1319 = vpow.pop %v1318
      %v1320 = vmul.f32 %v1297, 1.442695
      %v1321 = vpow.pop %v1320
      %v1322 = vmul.f32 %v1298, 1.442695
      %v1323 = vpow.pop %v1322
      %v1324 = vmul.f32 %v1299, 1.442695
      %v1325 = vpow.pop %v1324
      %v1326 = vmul.f32 %v1300, 1.442695
      %v1327 = vpow.pop %v1326
      %v1328 = vmul.f32 %v1301, 1.442695
      %v1329 = vpow.pop %v1328
      %v1330 = vmul.f32 %v1302, 1.442695
      %v1331 = vpow.pop %v1330
      %v1332 = vmul.f32 %v1303, 1.442695
      %v1333 = vpow.pop %v1332
      %v1334 = vmul.f32 %v1304, 1.442695
      %v1335 = vpow.pop %v1334
      %v1336 = vmul.f32 %v1305, 1.442695
      %v1337 = vpow.pop %v1336
      %v1338 = vadd.f32 %v1307, 1.0
      %v1339 = vadd.f32 %v1309, 1.0
      %v1340 = vadd.f32 %v1311, 1.0
      %v1341 = vadd.f32 %v1313, 1.0
      %v1342 = vadd.f32 %v1315, 1.0
      %v1343 = vadd.f32 %v1317, 1.0
      %v1344 = vadd.f32 %v1319, 1.0
      %v1345 = vadd.f32 %v1321, 1.0
      %v1346 = vadd.f32 %v1323, 1.0
      %v1347 = vadd.f32 %v1325, 1.0
      %v1348 = vadd.f32 %v1327, 1.0
      %v1349 = vadd.f32 %v1329, 1.0
      %v1350 = vadd.f32 %v1331, 1.0
      %v1351 = vadd.f32 %v1333, 1.0
      %v1352 = vadd.f32 %v1335, 1.0
      %v1353 = vadd.f32 %v1337, 1.0
      %v1354 = vrcp.pop %v1338
      %v1355 = vmul.f32 %v1338, %v1354
      %v1356 = vsub.f32 1.0, %v1355
      %v1357 = vmul.f32 %v1354, %v1356
      %v1358 = vadd.f32 %v1354, %v1357
      %vm1359 = vweird.f32 %v1338
      %vm1360 = vweird.f32 %v1354
      %vm1361 = vmor %vm1359, %vm1360
      %v1362 = vsel %vm1361, %v1354, %v1358
      %v1363 = vand.u32 2147483647, %v1338
      %vm1364 = vcmp.eq.f32.partialorder %v1363, 8.507059e+37
      %v1365 = vand.u32 %v1338, 2147483648
      %v1366 = vor.u32 1.1754944e-38, %v1365
      %v1367 = vsel %vm1364, %v1366, %v1362
      %v1368 = vmul.f32 1.0, %v1367
      %v1369 = vrcp.pop %v1339
      %v1370 = vmul.f32 %v1339, %v1369
      %v1371 = vsub.f32 1.0, %v1370
      %v1372 = vmul.f32 %v1369, %v1371
      %v1373 = vadd.f32 %v1369, %v1372
      %vm1374 = vweird.f32 %v1339
      %vm1375 = vweird.f32 %v1369
      %vm1376 = vmor %vm1374, %vm1375
      %v1377 = vsel %vm1376, %v1369, %v1373
      %v1378 = vand.u32 2147483647, %v1339
      %vm1379 = vcmp.eq.f32.partialorder %v1378, 8.507059e+37
      %v1380 = vand.u32 %v1339, 2147483648
      %v1381 = vor.u32 1.1754944e-38, %v1380
      %v1382 = vsel %vm1379, %v1381, %v1377
      %v1383 = vmul.f32 1.0, %v1382
      %v1384 = vrcp.pop %v1340
      %v1385 = vmul.f32 %v1340, %v1384
      %v1386 = vsub.f32 1.0, %v1385
      %v1387 = vmul.f32 %v1384, %v1386
      %v1388 = vadd.f32 %v1384, %v1387
      %vm1389 = vweird.f32 %v1340
      %vm1390 = vweird.f32 %v1384
      %vm1391 = vmor %vm1389, %vm1390
      %v1392 = vsel %vm1391, %v1384, %v1388
      %v1393 = vand.u32 2147483647, %v1340
      %vm1394 = vcmp.eq.f32.partialorder %v1393, 8.507059e+37
      %v1395 = vand.u32 %v1340, 2147483648
      %v1396 = vor.u32 1.1754944e-38, %v1395
      %v1397 = vsel %vm1394, %v1396, %v1392
      %v1398 = vmul.f32 1.0, %v1397
      %v1399 = vrcp.pop %v1341
      %v1400 = vmul.f32 %v1341, %v1399
      %v1401 = vsub.f32 1.0, %v1400
      %v1402 = vmul.f32 %v1399, %v1401
      %v1403 = vadd.f32 %v1399, %v1402
      %vm1404 = vweird.f32 %v1341
      %vm1405 = vweird.f32 %v1399
      %vm1406 = vmor %vm1404, %vm1405
      %v1407 = vsel %vm1406, %v1399, %v1403
      %v1408 = vand.u32 2147483647, %v1341
      %vm1409 = vcmp.eq.f32.partialorder %v1408, 8.507059e+37
      %v1410 = vand.u32 %v1341, 2147483648
      %v1411 = vor.u32 1.1754944e-38, %v1410
      %v1412 = vsel %vm1409, %v1411, %v1407
      %v1413 = vmul.f32 1.0, %v1412
      %v1414 = vrcp.pop %v1342
      %v1415 = vmul.f32 %v1342, %v1414
      %v1416 = vsub.f32 1.0, %v1415
      %v1417 = vmul.f32 %v1414, %v1416
      %v1418 = vadd.f32 %v1414, %v1417
      %vm1419 = vweird.f32 %v1342
      %vm1420 = vweird.f32 %v1414
      %vm1421 = vmor %vm1419, %vm1420
      %v1422 = vsel %vm1421, %v1414, %v1418
      %v1423 = vand.u32 2147483647, %v1342
      %vm1424 = vcmp.eq.f32.partialorder %v1423, 8.507059e+37
      %v1425 = vand.u32 %v1342, 2147483648
      %v1426 = vor.u32 1.1754944e-38, %v1425
      %v1427 = vsel %vm1424, %v1426, %v1422
      %v1428 = vmul.f32 1.0, %v1427
      %v1429 = vrcp.pop %v1343
      %v1430 = vmul.f32 %v1343, %v1429
      %v1431 = vsub.f32 1.0, %v1430
      %v1432 = vmul.f32 %v1429, %v1431
      %v1433 = vadd.f32 %v1429, %v1432
      %vm1434 = vweird.f32 %v1343
      %vm1435 = vweird.f32 %v1429
      %vm1436 = vmor %vm1434, %vm1435
      %v1437 = vsel %vm1436, %v1429, %v1433
      %v1438 = vand.u32 2147483647, %v1343
      %vm1439 = vcmp.eq.f32.partialorder %v1438, 8.507059e+37
      %v1440 = vand.u32 %v1343, 2147483648
      %v1441 = vor.u32 1.1754944e-38, %v1440
      %v1442 = vsel %vm1439, %v1441, %v1437
      %v1443 = vmul.f32 1.0, %v1442
      %v1444 = vrcp.pop %v1344
      %v1445 = vmul.f32 %v1344, %v1444
      %v1446 = vsub.f32 1.0, %v1445
      %v1447 = vmul.f32 %v1444, %v1446
      %v1448 = vadd.f32 %v1444, %v1447
      %vm1449 = vweird.f32 %v1344
      %vm1450 = vweird.f32 %v1444
      %vm1451 = vmor %vm1449, %vm1450
      %v1452 = vsel %vm1451, %v1444, %v1448
      %v1453 = vand.u32 2147483647, %v1344
      %vm1454 = vcmp.eq.f32.partialorder %v1453, 8.507059e+37
      %v1455 = vand.u32 %v1344, 2147483648
      %v1456 = vor.u32 1.1754944e-38, %v1455
      %v1457 = vsel %vm1454, %v1456, %v1452
      %v1458 = vmul.f32 1.0, %v1457
      %v1459 = vrcp.pop %v1345
      %v1460 = vmul.f32 %v1345, %v1459
      %v1461 = vsub.f32 1.0, %v1460
      %v1462 = vmul.f32 %v1459, %v1461
      %v1463 = vadd.f32 %v1459, %v1462
      %vm1464 = vweird.f32 %v1345
      %vm1465 = vweird.f32 %v1459
      %vm1466 = vmor %vm1464, %vm1465
      %v1467 = vsel %vm1466, %v1459, %v1463
      %v1468 = vand.u32 2147483647, %v1345
      %vm1469 = vcmp.eq.f32.partialorder %v1468, 8.507059e+37
      %v1470 = vand.u32 %v1345, 2147483648
      %v1471 = vor.u32 1.1754944e-38, %v1470
      %v1472 = vsel %vm1469, %v1471, %v1467
      %v1473 = vmul.f32 1.0, %v1472
      %v1474 = vrcp.pop %v1346
      %v1475 = vmul.f32 %v1346, %v1474
      %v1476 = vsub.f32 1.0, %v1475
      %v1477 = vmul.f32 %v1474, %v1476
      %v1478 = vadd.f32 %v1474, %v1477
      %vm1479 = vweird.f32 %v1346
      %vm1480 = vweird.f32 %v1474
      %vm1481 = vmor %vm1479, %vm1480
      %v1482 = vsel %vm1481, %v1474, %v1478
      %v1483 = vand.u32 2147483647, %v1346
      %vm1484 = vcmp.eq.f32.partialorder %v1483, 8.507059e+37
      %v1485 = vand.u32 %v1346, 2147483648
      %v1486 = vor.u32 1.1754944e-38, %v1485
      %v1487 = vsel %vm1484, %v1486, %v1482
      %v1488 = vmul.f32 1.0, %v1487
      %v1489 = vrcp.pop %v1347
      %v1490 = vmul.f32 %v1347, %v1489
      %v1491 = vsub.f32 1.0, %v1490
      %v1492 = vmul.f32 %v1489, %v1491
      %v1493 = vadd.f32 %v1489, %v1492
      %vm1494 = vweird.f32 %v1347
      %vm1495 = vweird.f32 %v1489
      %vm1496 = vmor %vm1494, %vm1495
      %v1497 = vsel %vm1496, %v1489, %v1493
      %v1498 = vand.u32 2147483647, %v1347
      %vm1499 = vcmp.eq.f32.partialorder %v1498, 8.507059e+37
      %v1500 = vand.u32 %v1347, 2147483648
      %v1501 = vor.u32 1.1754944e-38, %v1500
      %v1502 = vsel %vm1499, %v1501, %v1497
      %v1503 = vmul.f32 1.0, %v1502
      %v1504 = vrcp.pop %v1348
      %v1505 = vmul.f32 %v1348, %v1504
      %v1506 = vsub.f32 1.0, %v1505
      %v1507 = vmul.f32 %v1504, %v1506
      %v1508 = vadd.f32 %v1504, %v1507
      %vm1509 = vweird.f32 %v1348
      %vm1510 = vweird.f32 %v1504
      %vm1511 = vmor %vm1509, %vm1510
      %v1512 = vsel %vm1511, %v1504, %v1508
      %v1513 = vand.u32 2147483647, %v1348
      %vm1514 = vcmp.eq.f32.partialorder %v1513, 8.507059e+37
      %v1515 = vand.u32 %v1348, 2147483648
      %v1516 = vor.u32 1.1754944e-38, %v1515
      %v1517 = vsel %vm1514, %v1516, %v1512
      %v1518 = vmul.f32 1.0, %v1517
      %v1519 = vrcp.pop %v1349
      %v1520 = vmul.f32 %v1349, %v1519
      %v1521 = vsub.f32 1.0, %v1520
      %v1522 = vmul.f32 %v1519, %v1521
      %v1523 = vadd.f32 %v1519, %v1522
      %vm1524 = vweird.f32 %v1349
      %vm1525 = vweird.f32 %v1519
      %vm1526 = vmor %vm1524, %vm1525
      %v1527 = vsel %vm1526, %v1519, %v1523
      %v1528 = vand.u32 2147483647, %v1349
      %vm1529 = vcmp.eq.f32.partialorder %v1528, 8.507059e+37
      %v1530 = vand.u32 %v1349, 2147483648
      %v1531 = vor.u32 1.1754944e-38, %v1530
      %v1532 = vsel %vm1529, %v1531, %v1527
      %v1533 = vmul.f32 1.0, %v1532
      %v1534 = vrcp.pop %v1350
      %v1535 = vmul.f32 %v1350, %v1534
      %v1536 = vsub.f32 1.0, %v1535
      %v1537 = vmul.f32 %v1534, %v1536
      %v1538 = vadd.f32 %v1534, %v1537
      %vm1539 = vweird.f32 %v1350
      %vm1540 = vweird.f32 %v1534
      %vm1541 = vmor %vm1539, %vm1540
      %v1542 = vsel %vm1541, %v1534, %v1538
      %v1543 = vand.u32 2147483647, %v1350
      %vm1544 = vcmp.eq.f32.partialorder %v1543, 8.507059e+37
      %v1545 = vand.u32 %v1350, 2147483648
      %v1546 = vor.u32 1.1754944e-38, %v1545
      %v1547 = vsel %vm1544, %v1546, %v1542
      %v1548 = vmul.f32 1.0, %v1547
      %v1549 = vrcp.pop %v1351
      %v1550 = vmul.f32 %v1351, %v1549
      %v1551 = vsub.f32 1.0, %v1550
      %v1552 = vmul.f32 %v1549, %v1551
      %v1553 = vadd.f32 %v1549, %v1552
      %vm1554 = vweird.f32 %v1351
      %vm1555 = vweird.f32 %v1549
      %vm1556 = vmor %vm1554, %vm1555
      %v1557 = vsel %vm1556, %v1549, %v1553
      %v1558 = vand.u32 2147483647, %v1351
      %vm1559 = vcmp.eq.f32.partialorder %v1558, 8.507059e+37
      %v1560 = vand.u32 %v1351, 2147483648
      %v1561 = vor.u32 1.1754944e-38, %v1560
      %v1562 = vsel %vm1559, %v1561, %v1557
      %v1563 = vmul.f32 1.0, %v1562
      %v1564 = vrcp.pop %v1352
      %v1565 = vmul.f32 %v1352, %v1564
      %v1566 = vsub.f32 1.0, %v1565
      %v1567 = vmul.f32 %v1564, %v1566
      %v1568 = vadd.f32 %v1564, %v1567
      %vm1569 = vweird.f32 %v1352
      %vm1570 = vweird.f32 %v1564
      %vm1571 = vmor %vm1569, %vm1570
      %v1572 = vsel %vm1571, %v1564, %v1568
      %v1573 = vand.u32 2147483647, %v1352
      %vm1574 = vcmp.eq.f32.partialorder %v1573, 8.507059e+37
      %v1575 = vand.u32 %v1352, 2147483648
      %v1576 = vor.u32 1.1754944e-38, %v1575
      %v1577 = vsel %vm1574, %v1576, %v1572
      %v1578 = vmul.f32 1.0, %v1577
      %v1579 = vrcp.pop %v1353
      %v1580 = vmul.f32 %v1353, %v1579
      %v1581 = vsub.f32 1.0, %v1580
      %v1582 = vmul.f32 %v1579, %v1581
      %v1583 = vadd.f32 %v1579, %v1582
      %vm1584 = vweird.f32 %v1353
      %vm1585 = vweird.f32 %v1579
      %vm1586 = vmor %vm1584, %vm1585
      %v1587 = vsel %vm1586, %v1579, %v1583
      %v1588 = vand.u32 2147483647, %v1353
      %vm1589 = vcmp.eq.f32.partialorder %v1588, 8.507059e+37
      %v1590 = vand.u32 %v1353, 2147483648
      %v1591 = vor.u32 1.1754944e-38, %v1590
      %v1592 = vsel %vm1589, %v1591, %v1587
      %v1593 = vmul.f32 1.0, %v1592
      %1595 = vset.pattern.permute.xlu0 0
      %1596 = vperm.xlu0 %1595, %v1368
      %v1597 = vpop.permute.xlu0 %1596
      %1600 = vset.pattern.permute.xlu0 0
      %1601 = vperm.xlu0 %1600, %v1383
      %v1602 = vpop.permute.xlu0 %1601
      %1605 = vset.pattern.permute.xlu0 0
      %1606 = vperm.xlu0 %1605, %v1398
      %v1607 = vpop.permute.xlu0 %1606
      %1610 = vset.pattern.permute.xlu0 0
      %1611 = vperm.xlu0 %1610, %v1413
      %v1612 = vpop.permute.xlu0 %1611
      %1615 = vset.pattern.permute.xlu0 0
      %1616 = vperm.xlu0 %1615, %v1428
      %v1617 = vpop.permute.xlu0 %1616
      %1620 = vset.pattern.permute.xlu0 0
      %1621 = vperm.xlu0 %1620, %v1443
      %v1622 = vpop.permute.xlu0 %1621
      %1625 = vset.pattern.permute.xlu0 0
      %1626 = vperm.xlu0 %1625, %v1458
      %v1627 = vpop.permute.xlu0 %1626
      %1630 = vset.pattern.permute.xlu0 0
      %1631 = vperm.xlu0 %1630, %v1473
      %v1632 = vpop.permute.xlu0 %1631
      %1635 = vset.pattern.permute.xlu0 0
      %1636 = vperm.xlu0 %1635, %v1488
      %v1637 = vpop.permute.xlu0 %1636
      %1640 = vset.pattern.permute.xlu0 0
      %1641 = vperm.xlu0 %1640, %v1503
      %v1642 = vpop.permute.xlu0 %1641
      %1645 = vset.pattern.permute.xlu0 0
      %1646 = vperm.xlu0 %1645, %v1518
      %v1647 = vpop.permute.xlu0 %1646
      %1650 = vset.pattern.permute.xlu0 0
      %1651 = vperm.xlu0 %1650, %v1533
      %v1652 = vpop.permute.xlu0 %1651
      %1655 = vset.pattern.permute.xlu0 0
      %1656 = vperm.xlu0 %1655, %v1548
      %v1657 = vpop.permute.xlu0 %1656
      %1660 = vset.pattern.permute.xlu0 0
      %1661 = vperm.xlu0 %1660, %v1563
      %v1662 = vpop.permute.xlu0 %1661
      %1665 = vset.pattern.permute.xlu0 0
      %1666 = vperm.xlu0 %1665, %v1578
      %v1667 = vpop.permute.xlu0 %1666
      %1670 = vset.pattern.permute.xlu0 0
      %1671 = vperm.xlu0 %1670, %v1593
      %v1672 = vpop.permute.xlu0 %1671
      %v1674 = vmul.f32 %v320, %v1597
      %v1675 = vmul.f32 %v321, %v1597
      %v1676 = vmul.f32 %v322, %v1602
      %v1677 = vmul.f32 %v323, %v1602
      %v1678 = vmul.f32 %v324, %v1607
      %v1679 = vmul.f32 %v325, %v1607
      %v1680 = vmul.f32 %v326, %v1612
      %v1681 = vmul.f32 %v327, %v1612
      %v1682 = vmul.f32 %v328, %v1617
      %v1683 = vmul.f32 %v329, %v1617
      %v1684 = vmul.f32 %v330, %v1622
      %v1685 = vmul.f32 %v331, %v1622
      %v1686 = vmul.f32 %v332, %v1627
      %v1687 = vmul.f32 %v333, %v1627
      %v1688 = vmul.f32 %v334, %v1632
      %v1689 = vmul.f32 %v335, %v1632
      %v1690 = vmul.f32 %v336, %v1637
      %v1691 = vmul.f32 %v337, %v1637
      %v1692 = vmul.f32 %v338, %v1642
      %v1693 = vmul.f32 %v339, %v1642
      %v1694 = vmul.f32 %v340, %v1647
      %v1695 = vmul.f32 %v341, %v1647
      %v1696 = vmul.f32 %v342, %v1652
      %v1697 = vmul.f32 %v343, %v1652
      %v1698 = vmul.f32 %v344, %v1657
      %v1699 = vmul.f32 %v345, %v1657
      %v1700 = vmul.f32 %v346, %v1662
      %v1701 = vmul.f32 %v347, %v1662
      %v1702 = vmul.f32 %v348, %v1667
      %v1703 = vmul.f32 %v349, %v1667
      %v1704 = vmul.f32 %v350, %v1672
      %v1705 = vmul.f32 %v351, %v1672
      %1706 = vst [vmem:[%s318] sm:$0xff] %v1674
      %1707 = vst.msk [vmem:[%s318 + $0x8] sm:$0xff] %vm371, %v1675
      %1708 = vst [vmem:[%s318 + $0x10] sm:$0xff] %v1676
      %1709 = vst.msk [vmem:[%s318 + $0x18] sm:$0xff] %vm371, %v1677
      %1710 = vst [vmem:[%s318 + $0x20] sm:$0xff] %v1678
      %1711 = vst.msk [vmem:[%s318 + $0x28] sm:$0xff] %vm371, %v1679
      %1712 = vst [vmem:[%s318 + $0x30] sm:$0xff] %v1680
      %1713 = vst.msk [vmem:[%s318 + $0x38] sm:$0xff] %vm371, %v1681
      %1714 = vst [vmem:[%s318 + $0x40] sm:$0xff] %v1682
      %1715 = vst.msk [vmem:[%s318 + $0x48] sm:$0xff] %vm371, %v1683
      %1716 = vst [vmem:[%s318 + $0x50] sm:$0xff] %v1684
      %1717 = vst.msk [vmem:[%s318 + $0x58] sm:$0xff] %vm371, %v1685
      %1718 = vst [vmem:[%s318 + $0x60] sm:$0xff] %v1686
      %1719 = vst.msk [vmem:[%s318 + $0x68] sm:$0xff] %vm371, %v1687
      %1720 = vst [vmem:[%s318 + $0x70] sm:$0xff] %v1688
      %1721 = vst.msk [vmem:[%s318 + $0x78] sm:$0xff] %vm371, %v1689
      %1722 = vst [vmem:[%s318 + $0x80] sm:$0xff] %v1690
      %1723 = vst.msk [vmem:[%s318 + $0x88] sm:$0xff] %vm371, %v1691
      %1724 = vst [vmem:[%s318 + $0x90] sm:$0xff] %v1692
      %1725 = vst.msk [vmem:[%s318 + $0x98] sm:$0xff] %vm371, %v1693
      %1726 = vst [vmem:[%s318 + $0xa0] sm:$0xff] %v1694
      %1727 = vst.msk [vmem:[%s318 + $0xa8] sm:$0xff] %vm371, %v1695
      %1728 = vst [vmem:[%s318 + $0xb0] sm:$0xff] %v1696
      %1729 = vst.msk [vmem:[%s318 + $0xb8] sm:$0xff] %vm371, %v1697
      %1730 = vst [vmem:[%s318 + $0xc0] sm:$0xff] %v1698
      %1731 = vst.msk [vmem:[%s318 + $0xc8] sm:$0xff] %vm371, %v1699
      %1732 = vst [vmem:[%s318 + $0xd0] sm:$0xff] %v1700
      %1733 = vst.msk [vmem:[%s318 + $0xd8] sm:$0xff] %vm371, %v1701
      %1734 = vst [vmem:[%s318 + $0xe0] sm:$0xff] %v1702
      %1735 = vst.msk [vmem:[%s318 + $0xe8] sm:$0xff] %vm371, %v1703
      %1736 = vst [vmem:[%s318 + $0xf0] sm:$0xff] %v1704
      %1737 = vst.msk [vmem:[%s318 + $0xf8] sm:$0xff] %vm371, %v1705
      %s1738 = smul.u32 16, %s25
      %p1739 = scmp.lt.s32.totalorder %s24, 1
      %s1740 = scalar_select %p1739, %s24, 1
      %p1741 = scmp.lt.s32.totalorder %s1738, 15
      %s1742 = scalar_select %p1741, %s1738, 15
      %s1743 = smul.addr %s1742, 2
      %s1744 = smul.addr %s1740, 32
      %s1745 = sadd.s32 %s1743, %s1744
      %s1746 = smul.addr %s1745, 8
      %s1747 = scalar_lea.vmem %s7, %s1746
      // Predicated region
      $region49: #{tpu_custom_call.1} parent=47 // pred_check
        %p1748 = pneg %p206
      $region50: #{tpu_custom_call.1} parent=47 // pred_check_branch
        %1750 = sbr.rel (%p1748) target = $region52
      $region51: #{tpu_custom_call.1} parent=47 // pred_region
        %s1751 = smul.u32 16, %s25
      $region52: #{tpu_custom_call.1} parent=47 // pred_fallthru
        _
    $region48: #{tpu_custom_call.1} parent=5 // pred_fallthru
      _
    %p1752 = scmp.le.s32.totalorder 2, %s15
    // Predicated region
    $region53: #{tpu_custom_call.1} parent=5 // pred_check
      %p1753 = pneg %p1752
    $region54: #{tpu_custom_call.1} parent=5 // pred_check_branch
      %1755 = sbr.rel (%p1753) target = $region56
    $region55: #{tpu_custom_call.1} parent=5 // pred_region
      %s1756 = ssub.s32 %s15, 2
      // Predicated region
      $region57: #{tpu_custom_call.1} parent=55 // pred_check
        %p1757 = pneg %p212
      $region58: #{tpu_custom_call.1} parent=55 // pred_check_branch
        %1759 = sbr.rel (%p1757) target = $region60
      $region59: #{tpu_custom_call.1} parent=55 // pred_region
        %s1760 = smul.u32 16, %s27
        %p1761 = scmp.lt.s32.totalorder %s26, 1
        %s1762 = scalar_select %p1761, %s26, 1
        %p1763 = scmp.lt.s32.totalorder %s1760, 15
        %s1764 = scalar_select %p1763, %s1760, 15
        %s1765 = smul.addr %s1764, 2
        %s1766 = smul.addr %s1762, 32
        %s1767 = sadd.s32 %s1765, %s1766
        %s1768 = smul.addr %s1767, 8
        %s1769 = scalar_lea.vmem %s7, %s1768
      $region60: #{tpu_custom_call.1} parent=55 // pred_fallthru
        _
    $region56: #{tpu_custom_call.1} parent=5 // pred_fallthru
      _
  $region6: #{tpu_custom_call.1} parent=0 // loop_footer
    %s19 = sadd.s32 1, %s15
  $region7: #{tpu_custom_call.1} parent=0 // loop_footer_branch
    %14 = sbr.rel target = $region3
  $region8: #{tpu_custom_call.1} parent=0 // loop_exit
    _

</llo_original>
